<compile_context>
chip_gen: v5e
topology: v5e:2x2
jax: 0.10.0
libtpu: 0.0.40
codegen_flags: <defaults>
</compile_context>

<pallas_src>
import numpy as np
import jax
import jax.numpy as jnp
from jax import lax
from jax.experimental import pallas as pl
from jax.experimental.pallas import tpu as pltpu

# ---------------- resnet50 stage0 hyper-parameters ----------------
CIN, COUT = 3, 64
KH = KW = 7
STRIDE, PAD = 2, 3
BN_EPS = 1e-5
KDIM = KH * KW * CIN  # 147


def _pick_rows_tile(M, cap=2048):
    """Largest row tile <= cap that divides M (multiple of 16 for bf16 sublane packing)."""
    if M <= cap:
        return M
    start = cap - (cap % 16)
    for t in range(start, 15, -16):
        if M % t == 0:
            return t
    return M  # fallback: single block


# -------- Pallas kernel 1: conv1 as im2col matmul + fused BN partial statistics --------
def _conv_bnstats_kernel(p_ref, w_ref, o_ref, s_ref, ss_ref):
    # p_ref: (TM, K) bf16 patches; w_ref: (K, COUT) bf16; o_ref: (TM, COUT) f32
    # s_ref/ss_ref: (1, 1, COUT) per-tile sum / sum-of-squares (for BatchNorm batch stats)
    acc = jnp.dot(p_ref[...], w_ref[...], preferred_element_type=jnp.float32)
    o_ref[...] = acc
    s_ref[...] = jnp.sum(acc, axis=0, keepdims=True)[None]
    ss_ref[...] = jnp.sum(acc * acc, axis=0, keepdims=True)[None]


def conv1_bn_stats_pallas(patches, w_mat, *, cap_rows=2048):
    M, K = patches.shape
    _, Cout = w_mat.shape
    tm = _pick_rows_tile(M, cap_rows)
    assert M % tm == 0
    nt = M // tm
    conv_out, tile_sum, tile_sumsq = pl.pallas_call(
        _conv_bnstats_kernel,
        out_shape=(
            jax.ShapeDtypeStruct((M, Cout), jnp.float32),
            jax.ShapeDtypeStruct((nt, 1, Cout), jnp.float32),
            jax.ShapeDtypeStruct((nt, 1, Cout), jnp.float32),
        ),
        grid=(nt,),
        in_specs=[
            pl.BlockSpec((tm, K), lambda i: (i, 0)),
            pl.BlockSpec((K, Cout), lambda i: (0, 0)),
        ],
        out_specs=(
            pl.BlockSpec((tm, Cout), lambda i: (i, 0)),
            pl.BlockSpec((1, 1, Cout), lambda i: (i, 0, 0)),
            pl.BlockSpec((1, 1, Cout), lambda i: (i, 0, 0)),
        ),
        compiler_params=pltpu.CompilerParams(
            dimension_semantics=("parallel",),
            vmem_limit_bytes=32 * 1024 * 1024,
        ),
    )(patches, w_mat)
    return conv_out, tile_sum[:, 0, :], tile_sumsq[:, 0, :]


# ------- Pallas kernel 2: fused BN(apply) + ReLU + MaxPool 3x3 / stride 2 / pad 1 -------
def _bn_relu_maxpool_kernel(x_ref, s_ref, b_ref, o_ref, shift_ref):
    # x_ref: (1, Ho, 2, Wp, C)  -- dim 2 is the W-parity (w = 2*wp + p); H, parity are major.
    # s_ref/b_ref: (1, 1, 1, C) BN scale/bias.  o_ref: (1, Hp, Wp, C).
    # shift_ref: (Hp, Wp+1, C) VMEM scratch used to shift the odd columns by one.
    x = x_ref[0]                                        # (Ho, 2, Wp, C)
    a = jnp.maximum(x * s_ref[...] + b_ref[...], 0.0)   # BN affine + ReLU (f32)
    Ho, _, Wp, C = x.shape
    Hp = Ho // 2

    # --- row pooling: out row i = max over input rows (2i-1, 2i, 2i+1) ---
    # zero padding is exact because a >= 0 after ReLU (PyTorch pads with -inf).
    a4 = a.reshape(Hp, 2, 2, Wp, C)                     # split H (major dim) -> free reshape
    r_even = a4[:, 0]                                   # rows 2i      (Hp, 2, Wp, C)
    r_odd = a4[:, 1]                                    # rows 2i+1
    r_up = jnp.concatenate(
        [jnp.zeros((1, 2, Wp, C), a.dtype), r_odd[:Hp - 1]], axis=0)   # rows 2i-1
    rm = jnp.maximum(jnp.maximum(r_up, r_even), r_odd)  # (Hp, 2, Wp, C)

    # --- column pooling: out col j = max over cols (2j-1, 2j, 2j+1) ---
    c_ctr = rm[:, 0]                                    # cols 2j      (Hp, Wp, C)
    c_rgt = rm[:, 1]                                    # cols 2j+1
    # cols 2j-1 = odd columns shifted right by one along Wp (zero fill at j=0):
    shift_ref[:, 0:1, :] = jnp.zeros((Hp, 1, C), jnp.float32)
    shift_ref[:, 1:Wp + 1, :] = c_rgt
    c_lft = shift_ref[:, 0:Wp, :]
    o_ref[...] = jnp.maximum(jnp.maximum(c_lft, c_ctr), c_rgt)[None]


def bn_relu_maxpool_pallas(x5, scale, bias):
    N, Ho, two, Wp, C = x5.shape
    assert two == 2 and Ho % 2 == 0
    Hp = Ho // 2
    s = scale.reshape(1, 1, 1, C).astype(jnp.float32)
    b = bias.reshape(1, 1, 1, C).astype(jnp.float32)
    return pl.pallas_call(
        _bn_relu_maxpool_kernel,
        out_shape=jax.ShapeDtypeStruct((N, Hp, Wp, C), jnp.float32),
        grid=(N,),
        in_specs=[
            pl.BlockSpec((1, Ho, 2, Wp, C), lambda n: (n, 0, 0, 0, 0)),
            pl.BlockSpec((1, 1, 1, C), lambda n: (0, 0, 0, 0)),
            pl.BlockSpec((1, 1, 1, C), lambda n: (0, 0, 0, 0)),
        ],
        out_specs=pl.BlockSpec((1, Hp, Wp, C), lambda n: (n, 0, 0, 0)),
        scratch_shapes=[pltpu.VMEM((Hp, Wp + 1, C), jnp.float32)],
        compiler_params=pltpu.CompilerParams(
            dimension_semantics=("parallel",),
            vmem_limit_bytes=32 * 1024 * 1024,
        ),
    )(x5, s, b)


# ---------------- full stage0 forward ----------------
def stage0_forward(x_nchw, params):
    w = params["conv_w"]                 # (COUT, CIN, KH, KW), PyTorch OIHW
    gamma, beta = params["bn_gamma"], params["bn_beta"]
    N, Cin, H, W = x_nchw.shape
    assert Cin == CIN
    Ho = (H + 2 * PAD - KH) // STRIDE + 1
    Wo = (W + 2 * PAD - KW) // STRIDE + 1
    assert Ho % 2 == 0 and Wo % 2 == 0, "maxpool tiling assumes even conv output dims"
    Wp = Wo // 2
    M = N * Ho * Wo

    # --- host glue: NCHW -> NHWC, pad, im2col in bf16, rows ordered (n, h, w_parity, w//2) ---
    x_nhwc = jnp.transpose(x_nchw, (0, 2, 3, 1)).astype(jnp.bfloat16)
    xp = jnp.pad(x_nhwc, ((0, 0), (PAD, PAD), (PAD, PAD), (0, 0)))
    per_parity = []
    for p in range(2):
        taps = []
        for ki in range(KH):
            for kj in range(KW):
                w0 = kj + 2 * p
                taps.append(xp[:, ki:ki + 2 * Ho - 1:2,
                               w0:w0 + 4 * (Wp - 1) + 1:4, :])        # (N, Ho, Wp, CIN)
        per_parity.append(jnp.stack(taps, axis=3))                     # (N, Ho, Wp, 49, CIN)
    patches = jnp.stack(per_parity, axis=2)                            # (N, Ho, 2, Wp, 49, CIN)
    patches = patches.reshape(M, KDIM)                                 # K ordered (kh, kw, cin)
    w_mat = jnp.transpose(w, (2, 3, 1, 0)).reshape(KDIM, COUT).astype(jnp.bfloat16)

    # --- kernel 1: conv1 on the MXU + fused BN partial statistics ---
    conv_out, tile_sum, tile_sumsq = conv1_bn_stats_pallas(patches, w_mat)

    # --- BatchNorm batch statistics (tiny per-channel finalize in plain JAX) ---
    mean = jnp.sum(tile_sum, axis=0) / M
    var = jnp.maximum(jnp.sum(tile_sumsq, axis=0) / M - mean * mean, 0.0)   # biased, like F.batch_norm
    scale = gamma / jnp.sqrt(var + BN_EPS)
    bias = beta - mean * scale

    # --- kernel 2: fused BN apply + ReLU + MaxPool, gridded over batch ---
    x5 = conv_out.reshape(N, Ho, 2, Wp, COUT)      # free reshape (row order matches)
    out_nhwc = bn_relu_maxpool_pallas(x5, scale, bias)   # (N, Hp, Wp, COUT)
    return jnp.transpose(out_nhwc, (0, 3, 1, 2))   # back to NCHW (module interface)


# ---------------- pure-JAX reference for verification ----------------
def stage0_reference(x_nchw, params):
    w, gamma, beta = params["conv_w"], params["bn_gamma"], params["bn_beta"]
    y = lax.conv_general_dilated(
        x_nchw, w, window_strides=(STRIDE, STRIDE),
        padding=((PAD, PAD), (PAD, PAD)),
        dimension_numbers=("NCHW", "OIHW", "NCHW"),
        precision=lax.Precision.HIGHEST)
    mean = jnp.mean(y, axis=(0, 2, 3), keepdims=True)
    var = jnp.var(y, axis=(0, 2, 3), keepdims=True)
    y = (y - mean) / jnp.sqrt(var + BN_EPS)
    y = y * gamma.reshape(1, -1, 1, 1) + beta.reshape(1, -1, 1, 1)
    y = jnp.maximum(y, 0.0)
    y = lax.reduce_window(y, -jnp.inf, lax.max,
                          window_dimensions=(1, 1, 3, 3),
                          window_strides=(1, 1, 2, 2),
                          padding=((0, 0), (0, 0), (1, 1), (1, 1)))
    return y


if __name__ == "__main__":
    key = jax.random.PRNGKey(0)
    kx, kw, kg, kb = jax.random.split(key, 4)
    N, H, W = 2, 32, 32
    x = jax.random.normal(kx, (N, CIN, H, W), dtype=jnp.float32)
    params = {
        "conv_w": 0.05 * jax.random.normal(kw, (COUT, CIN, KH, KW), jnp.float32),
        "bn_gamma": 1.0 + 0.1 * jax.random.normal(kg, (COUT,), jnp.float32),
        "bn_beta": 0.1 * jax.random.normal(kb, (COUT,), jnp.float32),
    }

    out = jax.block_until_ready(jax.jit(stage0_forward)(x, params))
    ref = jax.block_until_ready(jax.jit(stage0_reference)(x, params))

    assert out.shape == (N, COUT, H // 4, W // 4), out.shape
    # bf16 matmul inputs (f32 accumulation) -> slightly looser tolerance vs f32 reference.
    np.testing.assert_allclose(np.asarray(out), np.asarray(ref), rtol=2e-2, atol=3e-2)
    print("KERNEL_OK")
</pallas_src>

<mosaic_0001>
module attributes {stable_mosaic.version = 11 : i64} {
  func.func @_conv_bnstats_kernel(%arg0: i32, %arg1: memref<512x147xbf16, #tpu.memory_space<vmem>>, %arg2: memref<147x64xbf16, #tpu.memory_space<vmem>>, %arg3: memref<512x64xf32, #tpu.memory_space<vmem>>, %arg4: memref<1x1x64xf32, #tpu.memory_space<vmem>>, %arg5: memref<1x1x64xf32, #tpu.memory_space<vmem>>) attributes {dimension_semantics = [#tpu.dimension_semantics<parallel>], iteration_bounds = array<i64: 1>, scalar_prefetch = 0 : i64, scratch_operands = 0 : i64, tpu.core_type = #tpu.core_type<tc>, window_params = [{transform_indices = @transform_0, window_bounds = array<i64: 512, 147>}, {pipeline_mode = #tpu.pipeline_mode<synchronous>, transform_indices = @transform_1, window_bounds = array<i64: 147, 64>}, {transform_indices = @transform_2, window_bounds = array<i64: 512, 64>}, {transform_indices = @transform_3, window_bounds = array<i64: 1, 1, 64>}, {transform_indices = @transform_4, window_bounds = array<i64: 1, 1, 64>}]} {
    %c0 = arith.constant 0 : index
    %c0_0 = arith.constant 0 : index
    %0 = vector.load %arg1[%c0, %c0_0] : memref<512x147xbf16, #tpu.memory_space<vmem>>, vector<512x147xbf16>
    %c0_1 = arith.constant 0 : index
    %c0_2 = arith.constant 0 : index
    %1 = vector.load %arg2[%c0_1, %c0_2] : memref<147x64xbf16, #tpu.memory_space<vmem>>, vector<147x64xbf16>
    %cst = arith.constant dense<0.000000e+00> : vector<512x64xf32>
    %2 = tpu.matmul %0, %1, %cst {dimension_numbers = #tpu.dot_dimension_numbers<[1], [0], [0], [1], [0, 0, 1, 1], [], []>} : vector<512x147xbf16>, vector<147x64xbf16>, vector<512x64xf32> -> vector<512x64xf32>
    %c0_3 = arith.constant 0 : index
    %c0_4 = arith.constant 0 : index
    %3 = vector.load %arg3[%c0_3, %c0_4] : memref<512x64xf32, #tpu.memory_space<vmem>>, vector<512x64xf32>
    tpu.vector_store %arg3[%c0_3, %c0_4], %2 {strides = array<i32>} : memref<512x64xf32, #tpu.memory_space<vmem>>, vector<512x64xf32>,
    %cst_5 = arith.constant dense<0.000000e+00> : vector<64xf32>
    %4 = vector.multi_reduction <add>, %2, %cst_5 [0] : vector<512x64xf32> to vector<64xf32>
    %5 = vector.shape_cast %4 : vector<64xf32> to vector<1x64xf32>
    %6 = vector.shape_cast %5 : vector<1x64xf32> to vector<1x1x64xf32>
    %c0_6 = arith.constant 0 : index
    %c0_7 = arith.constant 0 : index
    %c0_8 = arith.constant 0 : index
    %7 = vector.load %arg4[%c0_6, %c0_7, %c0_8] : memref<1x1x64xf32, #tpu.memory_space<vmem>>, vector<1x1x64xf32>
    tpu.vector_store %arg4[%c0_6, %c0_7, %c0_8], %6 {strides = array<i32>} : memref<1x1x64xf32, #tpu.memory_space<vmem>>, vector<1x1x64xf32>,
    %8 = arith.mulf %2, %2 : vector<512x64xf32>
    %cst_9 = arith.constant dense<0.000000e+00> : vector<64xf32>
    %9 = vector.multi_reduction <add>, %8, %cst_9 [0] : vector<512x64xf32> to vector<64xf32>
    %10 = vector.shape_cast %9 : vector<64xf32> to vector<1x64xf32>
    %11 = vector.shape_cast %10 : vector<1x64xf32> to vector<1x1x64xf32>
    %c0_10 = arith.constant 0 : index
    %c0_11 = arith.constant 0 : index
    %c0_12 = arith.constant 0 : index
    %12 = vector.load %arg5[%c0_10, %c0_11, %c0_12] : memref<1x1x64xf32, #tpu.memory_space<vmem>>, vector<1x1x64xf32>
    tpu.vector_store %arg5[%c0_10, %c0_11, %c0_12], %11 {strides = array<i32>} : memref<1x1x64xf32, #tpu.memory_space<vmem>>, vector<1x1x64xf32>,
    return
  }
  func.func @transform_0(%arg0: i32) -> (i32, i32) {
    %c0_i32 = arith.constant 0 : i32
    %c0_i32_0 = arith.constant 0 : i32
    return %arg0, %c0_i32 : i32, i32
  }
  func.func @transform_1(%arg0: i32) -> (i32, i32) {
    %c0_i32 = arith.constant 0 : i32
    %c0_i32_0 = arith.constant 0 : i32
    %c0_i32_1 = arith.constant 0 : i32
    return %c0_i32, %c0_i32_0 : i32, i32
  }
  func.func @transform_2(%arg0: i32) -> (i32, i32) {
    %c0_i32 = arith.constant 0 : i32
    %c0_i32_0 = arith.constant 0 : i32
    return %arg0, %c0_i32 : i32, i32
  }
  func.func @transform_3(%arg0: i32) -> (i32, i32, i32) {
    %c0_i32 = arith.constant 0 : i32
    %c0_i32_0 = arith.constant 0 : i32
    %c0_i32_1 = arith.constant 0 : i32
    return %arg0, %c0_i32, %c0_i32_0 : i32, i32, i32
  }
  func.func @transform_4(%arg0: i32) -> (i32, i32, i32) {
    %c0_i32 = arith.constant 0 : i32
    %c0_i32_0 = arith.constant 0 : i32
    %c0_i32_1 = arith.constant 0 : i32
    return %arg0, %c0_i32, %c0_i32_0 : i32, i32, i32
  }
}

module attributes {stable_mosaic.version = 11 : i64} {
  func.func @_bn_relu_maxpool_kernel(%arg0: i32, %arg1: memref<1x16x2x8x64xf32, #tpu.memory_space<vmem>>, %arg2: memref<1x1x1x64xf32, #tpu.memory_space<vmem>>, %arg3: memref<1x1x1x64xf32, #tpu.memory_space<vmem>>, %arg4: memref<1x8x8x64xf32, #tpu.memory_space<vmem>>, %arg5: memref<8x9x64xf32, #tpu.memory_space<vmem>>) attributes {dimension_semantics = [#tpu.dimension_semantics<parallel>], iteration_bounds = array<i64: 2>, scalar_prefetch = 0 : i64, scratch_operands = 1 : i64, tpu.core_type = #tpu.core_type<tc>, window_params = [{transform_indices = @transform_0, window_bounds = array<i64: 1, 16, 2, 8, 64>}, {pipeline_mode = #tpu.pipeline_mode<synchronous>, transform_indices = @transform_1, window_bounds = array<i64: 1, 1, 1, 64>}, {pipeline_mode = #tpu.pipeline_mode<synchronous>, transform_indices = @transform_2, window_bounds = array<i64: 1, 1, 1, 64>}, {transform_indices = @transform_3, window_bounds = array<i64: 1, 8, 8, 64>}]} {
    %c0 = arith.constant 0 : index
    %c0_0 = arith.constant 0 : index
    %c0_1 = arith.constant 0 : index
    %c0_2 = arith.constant 0 : index
    %c0_3 = arith.constant 0 : index
    %0 = vector.load %arg1[%c0, %c0_0, %c0_1, %c0_2, %c0_3] : memref<1x16x2x8x64xf32, #tpu.memory_space<vmem>>, vector<1x16x2x8x64xf32>
    %1 = vector.shape_cast %0 : vector<1x16x2x8x64xf32> to vector<16x2x8x64xf32>
    %c0_4 = arith.constant 0 : index
    %c0_5 = arith.constant 0 : index
    %c0_6 = arith.constant 0 : index
    %c0_7 = arith.constant 0 : index
    %2 = vector.load %arg2[%c0_4, %c0_5, %c0_6, %c0_7] : memref<1x1x1x64xf32, #tpu.memory_space<vmem>>, vector<1x1x1x64xf32>
    %3 = vector.broadcast %2 : vector<1x1x1x64xf32> to vector<16x2x8x64xf32>
    %4 = arith.mulf %1, %3 : vector<16x2x8x64xf32>
    %c0_8 = arith.constant 0 : index
    %c0_9 = arith.constant 0 : index
    %c0_10 = arith.constant 0 : index
    %c0_11 = arith.constant 0 : index
    %5 = vector.load %arg3[%c0_8, %c0_9, %c0_10, %c0_11] : memref<1x1x1x64xf32, #tpu.memory_space<vmem>>, vector<1x1x1x64xf32>
    %6 = vector.broadcast %5 : vector<1x1x1x64xf32> to vector<16x2x8x64xf32>
    %7 = arith.addf %4, %6 : vector<16x2x8x64xf32>
    %cst = arith.constant 0.000000e+00 : f32
    %8 = vector.broadcast %cst : f32 to vector<16x2x8x64xf32>
    %9 = arith.maximumf %7, %8 : vector<16x2x8x64xf32>
    %10 = vector.shape_cast %9 : vector<16x2x8x64xf32> to vector<8x2x2x8x64xf32>
    %11 = vector.extract_strided_slice %10 {offsets = [0, 0, 0, 0, 0], sizes = [8, 1, 2, 8, 64], strides = [1, 1, 1, 1, 1]} : vector<8x2x2x8x64xf32> to vector<8x1x2x8x64xf32>
    %12 = vector.shape_cast %11 : vector<8x1x2x8x64xf32> to vector<8x2x8x64xf32>
    %13 = vector.extract_strided_slice %10 {offsets = [0, 1, 0, 0, 0], sizes = [8, 1, 2, 8, 64], strides = [1, 1, 1, 1, 1]} : vector<8x2x2x8x64xf32> to vector<8x1x2x8x64xf32>
    %14 = vector.shape_cast %13 : vector<8x1x2x8x64xf32> to vector<8x2x8x64xf32>
    %cst_12 = arith.constant 0.000000e+00 : f32
    %15 = vector.broadcast %cst_12 : f32 to vector<1x2x8x64xf32>
    %16 = vector.extract_strided_slice %14 {offsets = [0, 0, 0, 0], sizes = [7, 2, 8, 64], strides = [1, 1, 1, 1]} : vector<8x2x8x64xf32> to vector<7x2x8x64xf32>
    %17 = tpu.concatenate %15, %16 in 0 : vector<1x2x8x64xf32>, vector<7x2x8x64xf32> -> vector<8x2x8x64xf32>
    %18 = arith.maximumf %17, %12 : vector<8x2x8x64xf32>
    %19 = arith.maximumf %18, %14 : vector<8x2x8x64xf32>
    %20 = vector.extract_strided_slice %19 {offsets = [0, 0, 0, 0], sizes = [8, 1, 8, 64], strides = [1, 1, 1, 1]} : vector<8x2x8x64xf32> to vector<8x1x8x64xf32>
    %21 = vector.shape_cast %20 : vector<8x1x8x64xf32> to vector<8x8x64xf32>
    %22 = vector.extract_strided_slice %19 {offsets = [0, 1, 0, 0], sizes = [8, 1, 8, 64], strides = [1, 1, 1, 1]} : vector<8x2x8x64xf32> to vector<8x1x8x64xf32>
    %23 = vector.shape_cast %22 : vector<8x1x8x64xf32> to vector<8x8x64xf32>
    %cst_13 = arith.constant 0.000000e+00 : f32
    %24 = vector.broadcast %cst_13 : f32 to vector<8x1x64xf32>
    %c0_14 = arith.constant 0 : index
    %c0_15 = arith.constant 0 : index
    %c0_16 = arith.constant 0 : index
    %25 = vector.load %arg5[%c0_14, %c0_15, %c0_16] : memref<8x9x64xf32, #tpu.memory_space<vmem>>, vector<8x1x64xf32>
    tpu.vector_store %arg5[%c0_14, %c0_15, %c0_16], %24 {strides = array<i32>} : memref<8x9x64xf32, #tpu.memory_space<vmem>>, vector<8x1x64xf32>,
    %c0_17 = arith.constant 0 : index
    %c1 = arith.constant 1 : index
    %c0_18 = arith.constant 0 : index
    %26 = vector.load %arg5[%c0_17, %c1, %c0_18] : memref<8x9x64xf32, #tpu.memory_space<vmem>>, vector<8x8x64xf32>
    tpu.vector_store %arg5[%c0_17, %c1, %c0_18], %23 {strides = array<i32>} : memref<8x9x64xf32, #tpu.memory_space<vmem>>, vector<8x8x64xf32>,
    %c0_19 = arith.constant 0 : index
    %c0_20 = arith.constant 0 : index
    %c0_21 = arith.constant 0 : index
    %27 = vector.load %arg5[%c0_19, %c0_20, %c0_21] : memref<8x9x64xf32, #tpu.memory_space<vmem>>, vector<8x8x64xf32>
    %28 = arith.maximumf %27, %21 : vector<8x8x64xf32>
    %29 = arith.maximumf %28, %23 : vector<8x8x64xf32>
    %30 = vector.shape_cast %29 : vector<8x8x64xf32> to vector<1x8x8x64xf32>
    %c0_22 = arith.constant 0 : index
    %c0_23 = arith.constant 0 : index
    %c0_24 = arith.constant 0 : index
    %c0_25 = arith.constant 0 : index
    %31 = vector.load %arg4[%c0_22, %c0_23, %c0_24, %c0_25] : memref<1x8x8x64xf32, #tpu.memory_space<vmem>>, vector<1x8x8x64xf32>
    tpu.vector_store %arg4[%c0_22, %c0_23, %c0_24, %c0_25], %30 {strides = array<i32>} : memref<1x8x8x64xf32, #tpu.memory_space<vmem>>, vector<1x8x8x64xf32>,
    return
  }
  func.func @transform_0(%arg0: i32) -> (i32, i32, i32, i32, i32) {
    %c0_i32 = arith.constant 0 : i32
    %c0_i32_0 = arith.constant 0 : i32
    %c0_i32_1 = arith.constant 0 : i32
    %c0_i32_2 = arith.constant 0 : i32
    %c0_i32_3 = arith.constant 0 : i32
    return %arg0, %c0_i32, %c0_i32_0, %c0_i32_1, %c0_i32_2 : i32, i32, i32, i32, i32
  }
  func.func @transform_1(%arg0: i32) -> (i32, i32, i32, i32) {
    %c0_i32 = arith.constant 0 : i32
    %c0_i32_0 = arith.constant 0 : i32
    %c0_i32_1 = arith.constant 0 : i32
    %c0_i32_2 = arith.constant 0 : i32
    %c0_i32_3 = arith.constant 0 : i32
    return %c0_i32, %c0_i32_0, %c0_i32_1, %c0_i32_2 : i32, i32, i32, i32
  }
  func.func @transform_2(%arg0: i32) -> (i32, i32, i32, i32) {
    %c0_i32 = arith.constant 0 : i32
    %c0_i32_0 = arith.constant 0 : i32
    %c0_i32_1 = arith.constant 0 : i32
    %c0_i32_2 = arith.constant 0 : i32
    %c0_i32_3 = arith.constant 0 : i32
    return %c0_i32, %c0_i32_0, %c0_i32_1, %c0_i32_2 : i32, i32, i32, i32
  }
  func.func @transform_3(%arg0: i32) -> (i32, i32, i32, i32) {
    %c0_i32 = arith.constant 0 : i32
    %c0_i32_0 = arith.constant 0 : i32
    %c0_i32_1 = arith.constant 0 : i32
    %c0_i32_2 = arith.constant 0 : i32
    return %arg0, %c0_i32, %c0_i32_0, %c0_i32_1 : i32, i32, i32, i32
  }
}

</mosaic_0001>

<llo_original>
// kernel: stage0_forward.3
$region0: #{stage0_forward.3}
  #allocation0 [shape = 'u32[]', space=smem, size = 0x4, offset = 0x4, fixed_abs, tag = 'smem constant byte address 0x4 - core index']
  #allocation1 [shape = 'u32[72,128]{1,0:T(1,128)}', space=vmem, size = 0x9000, scoped, tag = 'internal scratch']
  #allocation2 [shape = 'f32[8,9,64]{2,1,0:T(8,128)}', space=vmem, size = 0x10000, scoped, tag = 'scratch operand']
  %s0 = inlined_call_operand.vmem [shape: f32[2,16,2,8,64], index: 0, kind: input, shape index: {}]
  %s1 = inlined_call_operand.vmem [shape: f32[1,1,1,64], index: 1, kind: input, shape index: {}]
  %s2 = inlined_call_operand.vmem [shape: f32[1,1,1,64], index: 2, kind: input, shape index: {}]
  %s3 = inlined_call_operand.hbm [shape: f32[2,8,8,64], index: 3, kind: output, shape index: {}]
  %s4 = sld [smem:[#allocation0]]
  $region45: #{stage0_forward.3} parent=0
    _
  %s6 = ssub.s32 1, %s4
  %s7 = scalar_select 0, %s6, %s4
  $region1: #{stage0_forward.3} parent=0
    #allocation3 [shape = 'u8[65536]{0}', space=vmem, size = 0x10000, scoped, tag = 'output window, operand 0']
    #allocation4 [shape = 's32[2]{0}', space=sflag, size = 0x8, scoped, tag = 'scoped memory for stage0_forward.3']
    %8 = vsyncpa [#allocation4], 0
    %s9 = scalar_lea.sflag [#allocation4], 1
    %10 = vsyncpa %s9, 0
    loop: start=0, step=1, limit=4
    $region2: #{stage0_forward.3} parent=1 // loop_pre_header
      _
    $region3: #{stage0_forward.3} parent=1 // loop_header
      %s12 = sphi 0, %s16
      %p13 = scmp.ge.s32.totalorder %s12, 4
      %s22 = sphi 0, %s24
      %s25 = sphi 0, %s22
      %s26 = sphi 0, %s25
      %s42 = sphi 0, %s26
      %s46 = sphi 0, %s46
      %s48 = sphi 0, %s46
      %s49 = sphi 0, %s48
      %s63 = sphi 0, %s49
      %s67 = sphi 0, %s67
      %s69 = sphi 0, %s67
      %s70 = sphi 0, %s69
      %s84 = sphi 0, %s70
      %s90 = sphi 0, %s92
      %s93 = sphi 0, %s90
      %s94 = sphi 0, %s93
      %s110 = sphi 0, %s94
    $region4: #{stage0_forward.3} parent=1 // loop_header_branch
      %15 = sbr.rel (%p13) target = $region8
    $region5: #{stage0_forward.3} parent=1 // loop_body
      %s17 = ssub.s32 %s12, 1
      %s18 = ssub.s32 %s12, 2
      %s19 = sadd.s32 %s12, 1
      %s20 = ssub.s32 %s12, %s19
      %p21 = scmp.eq.s32.totalorder %s20, 0
      %s23 = sadd.s32 %s22, 1
      %s24 = scalar_select %p21, %s22, %s23
      %p27 = pneg %p21
      %p28 = scmp.eq.s32.totalorder %s12, 1
      %p29 = por %p27, %p28
      %p30 = scmp.ne.s32.totalorder %s22, %s25
      %p31 = scmp.eq.s32.totalorder %s12, 0
      %p32 = por %p30, %p31
      %p33 = scmp.ne.s32.totalorder %s22, %s25
      %p34 = scmp.eq.s32.totalorder %s17, 1
      %p35 = por %p33, %p34
      %p36 = scmp.ne.s32.totalorder %s25, %s26
      %p37 = scmp.eq.s32.totalorder %s17, 0
      %p38 = por %p36, %p37
      %p39 = scmp.ne.s32.totalorder %s25, %s26
      %p40 = scmp.eq.s32.totalorder %s18, 1
      %p41 = por %p39, %p40
      %p43 = scmp.ne.s32.totalorder %s26, %s42
      %p44 = scmp.eq.s32.totalorder %s18, 0
      %p45 = por %p43, %p44
      %s47 = sadd.s32 %s46, 1
      %p50 = scmp.eq.s32.totalorder %s12, 1
      %p51 = scmp.ne.s32.totalorder %s46, %s48
      %p52 = scmp.eq.s32.totalorder %s12, 0
      %p53 = por %p51, %p52
      %p54 = scmp.ne.s32.totalorder %s46, %s48
      %p55 = scmp.eq.s32.totalorder %s17, 1
      %p56 = por %p54, %p55
      %p57 = scmp.ne.s32.totalorder %s48, %s49
      %p58 = scmp.eq.s32.totalorder %s17, 0
      %p59 = por %p57, %p58
      %p60 = scmp.ne.s32.totalorder %s48, %s49
      %p61 = scmp.eq.s32.totalorder %s18, 1
      %p62 = por %p60, %p61
      %p64 = scmp.ne.s32.totalorder %s49, %s63
      %p65 = scmp.eq.s32.totalorder %s18, 0
      %p66 = por %p64, %p65
      %s68 = sadd.s32 %s67, 1
      %p71 = scmp.eq.s32.totalorder %s12, 1
      %p72 = scmp.ne.s32.totalorder %s67, %s69
      %p73 = scmp.eq.s32.totalorder %s12, 0
      %p74 = por %p72, %p73
      %p75 = scmp.ne.s32.totalorder %s67, %s69
      %p76 = scmp.eq.s32.totalorder %s17, 1
      %p77 = por %p75, %p76
      %p78 = scmp.ne.s32.totalorder %s69, %s70
      %p79 = scmp.eq.s32.totalorder %s17, 0
      %p80 = por %p78, %p79
      %p81 = scmp.ne.s32.totalorder %s69, %s70
      %p82 = scmp.eq.s32.totalorder %s18, 1
      %p83 = por %p81, %p82
      %p85 = scmp.ne.s32.totalorder %s70, %s84
      %p86 = scmp.eq.s32.totalorder %s18, 0
      %p87 = por %p85, %p86
      %s88 = ssub.s32 %s12, %s19
      %p89 = scmp.eq.s32.totalorder %s88, 0
      %s91 = sadd.s32 %s90, 1
      %s92 = scalar_select %p89, %s90, %s91
      %p95 = pneg %p89
      %p96 = scmp.eq.s32.totalorder %s12, 1
      %p97 = por %p95, %p96
      %p98 = scmp.ne.s32.totalorder %s90, %s93
      %p99 = scmp.eq.s32.totalorder %s12, 0
      %p100 = por %p98, %p99
      %p101 = scmp.ne.s32.totalorder %s90, %s93
      %p102 = scmp.eq.s32.totalorder %s17, 1
      %p103 = por %p101, %p102
      %p104 = scmp.ne.s32.totalorder %s93, %s94
      %p105 = scmp.eq.s32.totalorder %s17, 0
      %p106 = por %p104, %p105
      %p107 = scmp.ne.s32.totalorder %s93, %s94
      %p108 = scmp.eq.s32.totalorder %s18, 1
      %p109 = por %p107, %p108
      %p111 = scmp.ne.s32.totalorder %s94, %s110
      %p112 = scmp.eq.s32.totalorder %s18, 0
      %p113 = por %p111, %p112
      %p114 = scmp.le.s32.totalorder 1, %s12
      %p115 = scmp.lt.s32.totalorder %s12, 3
      %p116 = pnand %p114, %p115
      %p117 = pneg %p116
      // Predicated region
      $region9: #{stage0_forward.3} parent=5 // pred_check
        _
      $region10: #{stage0_forward.3} parent=5 // pred_check_branch
        %119 = sbr.rel (%p116) target = $region12
      $region11: #{stage0_forward.3} parent=5 // pred_region
        %s120 = ssub.s32 %s12, 1
        // Predicated region
        $region13: #{stage0_forward.3} parent=11 // pred_check
          %p121 = pneg %p59
        $region14: #{stage0_forward.3} parent=11 // pred_check_branch
          %123 = sbr.rel (%p121) target = $region16
        $region15: #{stage0_forward.3} parent=11 // pred_region
          _
        $region16: #{stage0_forward.3} parent=11 // pred_fallthru
          _
        // Predicated region
        $region17: #{stage0_forward.3} parent=11 // pred_check
          %p124 = pneg %p80
        $region18: #{stage0_forward.3} parent=11 // pred_check_branch
          %126 = sbr.rel (%p124) target = $region20
        $region19: #{stage0_forward.3} parent=11 // pred_region
          _
        $region20: #{stage0_forward.3} parent=11 // pred_fallthru
          _
      $region12: #{stage0_forward.3} parent=5 // pred_fallthru
        _
      %p127 = scmp.lt.s32.totalorder %s12, 2
      // Predicated region
      $region21: #{stage0_forward.3} parent=5 // pred_check
        %p128 = pneg %p127
      $region22: #{stage0_forward.3} parent=5 // pred_check_branch
        %130 = sbr.rel (%p128) target = $region24
      $region23: #{stage0_forward.3} parent=5 // pred_region
        // Predicated region
        $region25: #{stage0_forward.3} parent=23 // pred_check
          %p131 = pneg %p32
        $region26: #{stage0_forward.3} parent=23 // pred_check_branch
          %133 = sbr.rel (%p131) target = $region28
        $region27: #{stage0_forward.3} parent=23 // pred_region
          %p134 = scmp.lt.s32.totalorder %s12, 1
          %s135 = scalar_select %p134, %s12, 1
          %s136 = smul.addr %s135, 32
          %s137 = smul.addr %s136, 8
          %s138 = scalar_lea.vmem %s0, %s137
        $region28: #{stage0_forward.3} parent=23 // pred_fallthru
          _
      $region24: #{stage0_forward.3} parent=5 // pred_fallthru
        _
      %p139 = scmp.le.s32.totalorder 1, %s12
      %p140 = scmp.lt.s32.totalorder %s12, 3
      %p141 = pnand %p139, %p140
      %p142 = pneg %p141
      // Predicated region
      $region29: #{stage0_forward.3} parent=5 // pred_check
        _
      $region30: #{stage0_forward.3} parent=5 // pred_check_branch
        %144 = sbr.rel (%p141) target = $region32
      $region31: #{stage0_forward.3} parent=5 // pred_region
        %s145 = ssub.s32 %s12, 1
        %p146 = scmp.lt.s32.totalorder %s17, 1
        %s147 = scalar_select %p146, %s17, 1
        %s148 = smul.addr %s147, 32
        %s149 = smul.addr %s148, 8
        %s150 = scalar_lea.vmem %s0, %s149
        %p151 = pneg %p38
        %p152 = pneg %p35
        %p153 = pneg %p59
        %p154 = pneg %p56
        %p155 = pneg %p80
        %p156 = pneg %p77
        %p157 = pneg %p106
        %p158 = pneg %p103
        %s159 = sand.u32 %s93, 1
        %s160 = scalar_lea.sflag [#allocation4], %s159
        %s161 = sand.u32 %s93, 1
        %s162 = smul.addr %s161, 64
        %s163 = scalar_lea.vmem [#allocation3], %s162
        %p164 = scmp.lt.s32.totalorder %s17, 1
        %s165 = scalar_select %p164, %s17, 1
        %s166 = smul.addr %s165, 32
        %s167 = smul.addr %s166, 8
        %s168 = scalar_lea.vmem %s0, %s167
        %v169 = vld [vmem:[%s168] sm:$0xff]
        %v170 = vld [vmem:[%s168 + $0x8] sm:$0xff]
        %v171 = vld [vmem:[%s168 + $0x10] sm:$0xff]
        %v172 = vld [vmem:[%s168 + $0x18] sm:$0xff]
        %v173 = vld [vmem:[%s168 + $0x20] sm:$0xff]
        %v174 = vld [vmem:[%s168 + $0x28] sm:$0xff]
        %v175 = vld [vmem:[%s168 + $0x30] sm:$0xff]
        %v176 = vld [vmem:[%s168 + $0x38] sm:$0xff]
        %v177 = vld [vmem:[%s168 + $0x40] sm:$0xff]
        %v178 = vld [vmem:[%s168 + $0x48] sm:$0xff]
        %v179 = vld [vmem:[%s168 + $0x50] sm:$0xff]
        %v180 = vld [vmem:[%s168 + $0x58] sm:$0xff]
        %v181 = vld [vmem:[%s168 + $0x60] sm:$0xff]
        %v182 = vld [vmem:[%s168 + $0x68] sm:$0xff]
        %v183 = vld [vmem:[%s168 + $0x70] sm:$0xff]
        %v184 = vld [vmem:[%s168 + $0x78] sm:$0xff]
        %v185 = vld [vmem:[%s168 + $0x80] sm:$0xff]
        %v186 = vld [vmem:[%s168 + $0x88] sm:$0xff]
        %v187 = vld [vmem:[%s168 + $0x90] sm:$0xff]
        %v188 = vld [vmem:[%s168 + $0x98] sm:$0xff]
        %v189 = vld [vmem:[%s168 + $0xa0] sm:$0xff]
        %v190 = vld [vmem:[%s168 + $0xa8] sm:$0xff]
        %v191 = vld [vmem:[%s168 + $0xb0] sm:$0xff]
        %v192 = vld [vmem:[%s168 + $0xb8] sm:$0xff]
        %v193 = vld [vmem:[%s168 + $0xc0] sm:$0xff]
        %v194 = vld [vmem:[%s168 + $0xc8] sm:$0xff]
        %v195 = vld [vmem:[%s168 + $0xd0] sm:$0xff]
        %v196 = vld [vmem:[%s168 + $0xd8] sm:$0xff]
        %v197 = vld [vmem:[%s168 + $0xe0] sm:$0xff]
        %v198 = vld [vmem:[%s168 + $0xe8] sm:$0xff]
        %v199 = vld [vmem:[%s168 + $0xf0] sm:$0xff]
        %v200 = vld [vmem:[%s168 + $0xf8] sm:$0xff]
        %v201 = vld [vmem:[%s1] sm:$0x1]
        %v203 = vperm.slane %v201, 0
        %v205 = vmul.f32 %v169, %v203
        %v206 = vmul.f32 %v170, %v203
        %v207 = vmul.f32 %v171, %v203
        %v208 = vmul.f32 %v172, %v203
        %v209 = vmul.f32 %v173, %v203
        %v210 = vmul.f32 %v174, %v203
        %v211 = vmul.f32 %v175, %v203
        %v212 = vmul.f32 %v176, %v203
        %v213 = vmul.f32 %v177, %v203
        %v214 = vmul.f32 %v178, %v203
        %v215 = vmul.f32 %v179, %v203
        %v216 = vmul.f32 %v180, %v203
        %v217 = vmul.f32 %v181, %v203
        %v218 = vmul.f32 %v182, %v203
        %v219 = vmul.f32 %v183, %v203
        %v220 = vmul.f32 %v184, %v203
        %v221 = vmul.f32 %v185, %v203
        %v222 = vmul.f32 %v186, %v203
        %v223 = vmul.f32 %v187, %v203
        %v224 = vmul.f32 %v188, %v203
        %v225 = vmul.f32 %v189, %v203
        %v226 = vmul.f32 %v190, %v203
        %v227 = vmul.f32 %v191, %v203
        %v228 = vmul.f32 %v192, %v203
        %v229 = vmul.f32 %v193, %v203
        %v230 = vmul.f32 %v194, %v203
        %v231 = vmul.f32 %v195, %v203
        %v232 = vmul.f32 %v196, %v203
        %v233 = vmul.f32 %v197, %v203
        %v234 = vmul.f32 %v198, %v203
        %v235 = vmul.f32 %v199, %v203
        %v236 = vmul.f32 %v200, %v203
        %v237 = vld [vmem:[%s2] sm:$0x1]
        %v239 = vperm.slane %v237, 0
        %v241 = vadd.f32 %v205, %v239
        %v242 = vadd.f32 %v206, %v239
        %v243 = vadd.f32 %v207, %v239
        %v244 = vadd.f32 %v208, %v239
        %v245 = vadd.f32 %v209, %v239
        %v246 = vadd.f32 %v210, %v239
        %v247 = vadd.f32 %v211, %v239
        %v248 = vadd.f32 %v212, %v239
        %v249 = vadd.f32 %v213, %v239
        %v250 = vadd.f32 %v214, %v239
        %v251 = vadd.f32 %v215, %v239
        %v252 = vadd.f32 %v216, %v239
        %v253 = vadd.f32 %v217, %v239
        %v254 = vadd.f32 %v218, %v239
        %v255 = vadd.f32 %v219, %v239
        %v256 = vadd.f32 %v220, %v239
        %v257 = vadd.f32 %v221, %v239
        %v258 = vadd.f32 %v222, %v239
        %v259 = vadd.f32 %v223, %v239
        %v260 = vadd.f32 %v224, %v239
        %v261 = vadd.f32 %v225, %v239
        %v262 = vadd.f32 %v226, %v239
        %v263 = vadd.f32 %v227, %v239
        %v264 = vadd.f32 %v228, %v239
        %v265 = vadd.f32 %v229, %v239
        %v266 = vadd.f32 %v230, %v239
        %v267 = vadd.f32 %v231, %v239
        %v268 = vadd.f32 %v232, %v239
        %v269 = vadd.f32 %v233, %v239
        %v270 = vadd.f32 %v234, %v239
        %v271 = vadd.f32 %v235, %v239
        %v272 = vadd.f32 %v236, %v239
        %v273 = vmax.f32 %v241, 0.0
        %v274 = vmax.f32 %v242, 0.0
        %v275 = vmax.f32 %v243, 0.0
        %v276 = vmax.f32 %v244, 0.0
        %v277 = vmax.f32 %v245, 0.0
        %v278 = vmax.f32 %v246, 0.0
        %v279 = vmax.f32 %v247, 0.0
        %v280 = vmax.f32 %v248, 0.0
        %v281 = vmax.f32 %v249, 0.0
        %v282 = vmax.f32 %v250, 0.0
        %v283 = vmax.f32 %v251, 0.0
        %v284 = vmax.f32 %v252, 0.0
        %v285 = vmax.f32 %v253, 0.0
        %v286 = vmax.f32 %v254, 0.0
        %v287 = vmax.f32 %v255, 0.0
        %v288 = vmax.f32 %v256, 0.0
        %v289 = vmax.f32 %v257, 0.0
        %v290 = vmax.f32 %v258, 0.0
        %v291 = vmax.f32 %v259, 0.0
        %v292 = vmax.f32 %v260, 0.0
        %v293 = vmax.f32 %v261, 0.0
        %v294 = vmax.f32 %v262, 0.0
        %v295 = vmax.f32 %v263, 0.0
        %v296 = vmax.f32 %v264, 0.0
        %v297 = vmax.f32 %v265, 0.0
        %v298 = vmax.f32 %v266, 0.0
        %v299 = vmax.f32 %v267, 0.0
        %v300 = vmax.f32 %v268, 0.0
        %v301 = vmax.f32 %v269, 0.0
        %v302 = vmax.f32 %v270, 0.0
        %v303 = vmax.f32 %v271, 0.0
        %v304 = vmax.f32 %v272, 0.0
        %v305 = vmax.f32 %v273, 0.0
        %v306 = vmax.f32 %v274, 0.0
        %v307 = vmax.f32 %v275, %v277
        %v308 = vmax.f32 %v276, %v278
        %v309 = vmax.f32 %v279, %v281
        %v310 = vmax.f32 %v280, %v282
        %v311 = vmax.f32 %v283, %v285
        %v312 = vmax.f32 %v284, %v286
        %v313 = vmax.f32 %v287, %v289
        %v314 = vmax.f32 %v288, %v290
        %v315 = vmax.f32 %v291, %v293
        %v316 = vmax.f32 %v292, %v294
        %v317 = vmax.f32 %v295, %v297
        %v318 = vmax.f32 %v296, %v298
        %v319 = vmax.f32 %v299, %v301
        %v320 = vmax.f32 %v300, %v302
        %v321 = vmax.f32 %v305, %v275
        %v322 = vmax.f32 %v306, %v276
        %v323 = vmax.f32 %v307, %v279
        %v324 = vmax.f32 %v308, %v280
        %v325 = vmax.f32 %v309, %v283
        %v326 = vmax.f32 %v310, %v284
        %v327 = vmax.f32 %v311, %v287
        %v328 = vmax.f32 %v312, %v288
        %v329 = vmax.f32 %v313, %v291
        %v330 = vmax.f32 %v314, %v292
        %v331 = vmax.f32 %v315, %v295
        %v332 = vmax.f32 %v316, %v296
        %v333 = vmax.f32 %v317, %v299
        %v334 = vmax.f32 %v318, %v300
        %v335 = vmax.f32 %v319, %v303
        %v336 = vmax.f32 %v320, %v304
        %vm337 = vcmask 516096
        %338 = vst.msk [vmem:[#allocation2] sm:$0x1] %vm337, 0.0
        %339 = vst.msk [vmem:[#allocation2 + $0x10] sm:$0x1] %vm337, 0.0
        %340 = vst.msk [vmem:[#allocation2 + $0x20] sm:$0x1] %vm337, 0.0
        %341 = vst.msk [vmem:[#allocation2 + $0x30] sm:$0x1] %vm337, 0.0
        %342 = vst.msk [vmem:[#allocation2 + $0x40] sm:$0x1] %vm337, 0.0
        %343 = vst.msk [vmem:[#allocation2 + $0x50] sm:$0x1] %vm337, 0.0
        %344 = vst.msk [vmem:[#allocation2 + $0x60] sm:$0x1] %vm337, 0.0
        %345 = vst.msk [vmem:[#allocation2 + $0x70] sm:$0x1] %vm337, 0.0
        %vm346 = vcmask 523264
        %347 = vst.msk [vmem:[#allocation2 + $0x1] sm:$0xff] %vm346, %v322
        %348 = vst.msk [vmem:[#allocation2 + $0x11] sm:$0xff] %vm346, %v324
        %349 = vst.msk [vmem:[#allocation2 + $0x21] sm:$0xff] %vm346, %v326
        %350 = vst.msk [vmem:[#allocation2 + $0x31] sm:$0xff] %vm346, %v328
        %351 = vst.msk [vmem:[#allocation2 + $0x41] sm:$0xff] %vm346, %v330
        %352 = vst.msk [vmem:[#allocation2 + $0x51] sm:$0xff] %vm346, %v332
        %353 = vst.msk [vmem:[#allocation2 + $0x61] sm:$0xff] %vm346, %v334
        %354 = vst.msk [vmem:[#allocation2 + $0x71] sm:$0xff] %vm346, %v336
        %v355 = vld [vmem:[#allocation2] sm:$0xff]
        %v356 = vld [vmem:[#allocation2 + $0x10] sm:$0xff]
        %v357 = vld [vmem:[#allocation2 + $0x20] sm:$0xff]
        %v358 = vld [vmem:[#allocation2 + $0x30] sm:$0xff]
        %v359 = vld [vmem:[#allocation2 + $0x40] sm:$0xff]
        %v360 = vld [vmem:[#allocation2 + $0x50] sm:$0xff]
        %v361 = vld [vmem:[#allocation2 + $0x60] sm:$0xff]
        %v362 = vld [vmem:[#allocation2 + $0x70] sm:$0xff]
        %v363 = vmax.f32 %v355, %v321
        %v364 = vmax.f32 %v356, %v323
        %v365 = vmax.f32 %v357, %v325
        %v366 = vmax.f32 %v358, %v327
        %v367 = vmax.f32 %v359, %v329
        %v368 = vmax.f32 %v360, %v331
        %v369 = vmax.f32 %v361, %v333
        %v370 = vmax.f32 %v362, %v335
        %v371 = vmax.f32 %v363, %v322
        %v372 = vmax.f32 %v364, %v324
        %v373 = vmax.f32 %v365, %v326
        %v374 = vmax.f32 %v366, %v328
        %v375 = vmax.f32 %v367, %v330
        %v376 = vmax.f32 %v368, %v332
        %v377 = vmax.f32 %v369, %v334
        %v378 = vmax.f32 %v370, %v336
        %379 = vst.msk [vmem:[%s163] sm:$0xff] %vm346, %v371
        %380 = vst.msk [vmem:[%s163 + $0x8] sm:$0xff] %vm346, %v372
        %381 = vst.msk [vmem:[%s163 + $0x10] sm:$0xff] %vm346, %v373
        %382 = vst.msk [vmem:[%s163 + $0x18] sm:$0xff] %vm346, %v374
        %383 = vst.msk [vmem:[%s163 + $0x20] sm:$0xff] %vm346, %v375
        %384 = vst.msk [vmem:[%s163 + $0x28] sm:$0xff] %vm346, %v376
        %385 = vst.msk [vmem:[%s163 + $0x30] sm:$0xff] %vm346, %v377
        %386 = vst.msk [vmem:[%s163 + $0x38] sm:$0xff] %vm346, %v378
        %s387 = sand.u32 %s93, 1
        %s388 = scalar_lea.sflag [#allocation4], %s387
        %s389 = sand.u32 %s93, 1
        %s390 = smul.addr %s389, 64
        %s391 = scalar_lea.vmem [#allocation3], %s390
        // Predicated region
        $region33: #{stage0_forward.3} parent=31 // pred_check
          %p392 = pneg %p103
        $region34: #{stage0_forward.3} parent=31 // pred_check_branch
          %394 = sbr.rel (%p392) target = $region36
        $region35: #{stage0_forward.3} parent=31 // pred_region
          %396 = vsyncadd %s388, 0
          %s397 = smul.addr %s17, 8
          %s398 = smul.addr %s397, 8
          %s399 = scalar_lea.hbm %s3, %s398
          %s400 = sshll.u32 %s391, 4
          %s401 = int_to_ptr.vmem [resolvable:$true] %s400
          %s402 = sshll.u32 %s399, 4
          %s403 = int_to_ptr.hbm [resolvable:$true] %s402
          %408 = dma.vmem_to_hbm [thread:$0]  %s401, 1024, %s403, %s388, 128, 128, 8
        $region36: #{stage0_forward.3} parent=31 // pred_fallthru
          _
      $region32: #{stage0_forward.3} parent=5 // pred_fallthru
        _
      %p409 = scmp.le.s32.totalorder 2, %s12
      // Predicated region
      $region37: #{stage0_forward.3} parent=5 // pred_check
        %p410 = pneg %p409
      $region38: #{stage0_forward.3} parent=5 // pred_check_branch
        %412 = sbr.rel (%p410) target = $region40
      $region39: #{stage0_forward.3} parent=5 // pred_region
        %s413 = ssub.s32 %s12, 2
        // Predicated region
        $region41: #{stage0_forward.3} parent=39 // pred_check
          %p414 = pneg %p109
        $region42: #{stage0_forward.3} parent=39 // pred_check_branch
          %416 = sbr.rel (%p414) target = $region44
        $region43: #{stage0_forward.3} parent=39 // pred_region
          %s417 = sand.u32 %s94, 1
          %s418 = scalar_lea.sflag [#allocation4], %s417
          %s419 = sand.u32 %s94, 1
          %s420 = smul.addr %s419, 64
          %s421 = scalar_lea.vmem [#allocation3], %s420
          %423 = dma.done %s418, 1024
        $region44: #{stage0_forward.3} parent=39 // pred_fallthru
          _
      $region40: #{stage0_forward.3} parent=5 // pred_fallthru
        _
    $region6: #{stage0_forward.3} parent=1 // loop_footer
      %s16 = sadd.s32 1, %s12
    $region7: #{stage0_forward.3} parent=1 // loop_footer_branch
      %11 = sbr.rel target = $region3
    $region8: #{stage0_forward.3} parent=1 // loop_exit
      _
    %424 = vsyncpa [#allocation4], 1
    %s425 = scalar_lea.sflag [#allocation4], 1
    %426 = vsyncpa %s425, 1

// kernel: stage0_forward.2
$region0: #{stage0_forward.2}
  #allocation0 [shape = 'u32[]', space=smem, size = 0x4, offset = 0x4, fixed_abs, tag = 'smem constant byte address 0x4 - core index']
  #allocation1 [shape = 'u32[72,128]{1,0:T(1,128)}', space=vmem, size = 0x9000, scoped, tag = 'internal scratch']
  %s0 = inlined_call_operand.vmem [shape: bf16[512,147], index: 0, kind: input, shape index: {}]
  %s1 = inlined_call_operand.vmem [shape: bf16[147,64], index: 1, kind: input, shape index: {}]
  %s2 = inlined_call_operand.vmem [shape: f32[512,64], index: 2, kind: output, shape index: {0}]
  %s3 = inlined_call_operand.vmem [shape: f32[1,1,64], index: 3, kind: output, shape index: {1}]
  %s4 = inlined_call_operand.vmem [shape: f32[1,1,64], index: 4, kind: output, shape index: {2}]
  %5 = xla_tuple %s2, %s3, %s4
  %s6 = sld [smem:[#allocation0]]
  $region34: #{stage0_forward.2} parent=0
    _
  %s8 = ssub.s32 1, %s6
  %s9 = scalar_select 0, %s8, %s6
  // Predicated region
  $region2: #{stage0_forward.2} parent=0 // pred_check
    _
  $region3: #{stage0_forward.2} parent=0 // pred_check_branch
    %11 = sbr.rel (0) target = $region5
  $region4: #{stage0_forward.2} parent=0 // pred_region
    _
  $region5: #{stage0_forward.2} parent=0 // pred_fallthru
    _
  // Predicated region
  $region6: #{stage0_forward.2} parent=0 // pred_check
    _
  $region7: #{stage0_forward.2} parent=0 // pred_check_branch
    %13 = sbr.rel (0) target = $region9
  $region8: #{stage0_forward.2} parent=0 // pred_region
    _
  $region9: #{stage0_forward.2} parent=0 // pred_fallthru
    _
  %v15 = vld [vmem:[%s0] sm:$0xff]
  %v16 = vld [vmem:[%s0 + $0x8] sm:$0xff]
  %v17 = vld [vmem:[%s0 + $0x10] sm:$0xff]
  %v18 = vld [vmem:[%s0 + $0x18] sm:$0xff]
  %v19 = vld [vmem:[%s0 + $0x20] sm:$0xff]
  %v20 = vld [vmem:[%s0 + $0x28] sm:$0xff]
  %v21 = vld [vmem:[%s0 + $0x30] sm:$0xff]
  %v22 = vld [vmem:[%s0 + $0x38] sm:$0xff]
  %v23 = vld [vmem:[%s0 + $0x40] sm:$0xff]
  %v24 = vld [vmem:[%s0 + $0x48] sm:$0xff]
  %v25 = vld [vmem:[%s0 + $0x50] sm:$0xff]
  %v26 = vld [vmem:[%s0 + $0x58] sm:$0xff]
  %v27 = vld [vmem:[%s0 + $0x60] sm:$0xff]
  %v28 = vld [vmem:[%s0 + $0x68] sm:$0xff]
  %v29 = vld [vmem:[%s0 + $0x70] sm:$0xff]
  %v30 = vld [vmem:[%s0 + $0x78] sm:$0xff]
  %v31 = vld [vmem:[%s0 + $0x80] sm:$0xff]
  %v32 = vld [vmem:[%s0 + $0x88] sm:$0xff]
  %v33 = vld [vmem:[%s0 + $0x90] sm:$0xff]
  %v34 = vld [vmem:[%s0 + $0x98] sm:$0xff]
  %v35 = vld [vmem:[%s0 + $0xa0] sm:$0xff]
  %v36 = vld [vmem:[%s0 + $0xa8] sm:$0xff]
  %v37 = vld [vmem:[%s0 + $0xb0] sm:$0xff]
  %v38 = vld [vmem:[%s0 + $0xb8] sm:$0xff]
  %v39 = vld [vmem:[%s0 + $0xc0] sm:$0xff]
  %v40 = vld [vmem:[%s0 + $0xc8] sm:$0xff]
  %v41 = vld [vmem:[%s0 + $0xd0] sm:$0xff]
  %v42 = vld [vmem:[%s0 + $0xd8] sm:$0xff]
  %v43 = vld [vmem:[%s0 + $0xe0] sm:$0xff]
  %v44 = vld [vmem:[%s0 + $0xe8] sm:$0xff]
  %v45 = vld [vmem:[%s0 + $0xf0] sm:$0xff]
  %v46 = vld [vmem:[%s0 + $0xf8] sm:$0xff]
  %v47 = vld [vmem:[%s0 + $0x100] sm:$0xff]
  %v48 = vld [vmem:[%s0 + $0x108] sm:$0xff]
  %v49 = vld [vmem:[%s0 + $0x110] sm:$0xff]
  %v50 = vld [vmem:[%s0 + $0x118] sm:$0xff]
  %v51 = vld [vmem:[%s0 + $0x120] sm:$0xff]
  %v52 = vld [vmem:[%s0 + $0x128] sm:$0xff]
  %v53 = vld [vmem:[%s0 + $0x130] sm:$0xff]
  %v54 = vld [vmem:[%s0 + $0x138] sm:$0xff]
  %v55 = vld [vmem:[%s0 + $0x140] sm:$0xff]
  %v56 = vld [vmem:[%s0 + $0x148] sm:$0xff]
  %v57 = vld [vmem:[%s0 + $0x150] sm:$0xff]
  %v58 = vld [vmem:[%s0 + $0x158] sm:$0xff]
  %v59 = vld [vmem:[%s0 + $0x160] sm:$0xff]
  %v60 = vld [vmem:[%s0 + $0x168] sm:$0xff]
  %v61 = vld [vmem:[%s0 + $0x170] sm:$0xff]
  %v62 = vld [vmem:[%s0 + $0x178] sm:$0xff]
  %v63 = vld [vmem:[%s0 + $0x180] sm:$0xff]
  %v64 = vld [vmem:[%s0 + $0x188] sm:$0xff]
  %v65 = vld [vmem:[%s0 + $0x190] sm:$0xff]
  %v66 = vld [vmem:[%s0 + $0x198] sm:$0xff]
  %v67 = vld [vmem:[%s0 + $0x1a0] sm:$0xff]
  %v68 = vld [vmem:[%s0 + $0x1a8] sm:$0xff]
  %v69 = vld [vmem:[%s0 + $0x1b0] sm:$0xff]
  %v70 = vld [vmem:[%s0 + $0x1b8] sm:$0xff]
  %v71 = vld [vmem:[%s0 + $0x1c0] sm:$0xff]
  %v72 = vld [vmem:[%s0 + $0x1c8] sm:$0xff]
  %v73 = vld [vmem:[%s0 + $0x1d0] sm:$0xff]
  %v74 = vld [vmem:[%s0 + $0x1d8] sm:$0xff]
  %v75 = vld [vmem:[%s0 + $0x1e0] sm:$0xff]
  %v76 = vld [vmem:[%s0 + $0x1e8] sm:$0xff]
  %v77 = vld [vmem:[%s0 + $0x1f0] sm:$0xff]
  %v78 = vld [vmem:[%s0 + $0x1f8] sm:$0xff]
  %v79 = vld [vmem:[%s1] sm:$0xf]
  %v80 = vld [vmem:[%s1 + $0x4] sm:$0xf]
  %v81 = vld [vmem:[%s1 + $0x8] sm:$0xf]
  %v82 = vld [vmem:[%s1 + $0xc] sm:$0xf]
  %v83 = vld [vmem:[%s1 + $0x10] sm:$0xf]
  %v84 = vld [vmem:[%s1 + $0x14] sm:$0xf]
  %v85 = vld [vmem:[%s1 + $0x18] sm:$0xf]
  %v86 = vld [vmem:[%s1 + $0x1c] sm:$0xf]
  %v87 = vld [vmem:[%s1 + $0x20] sm:$0xf]
  %v88 = vld [vmem:[%s1 + $0x24] sm:$0xf]
  %v89 = vld [vmem:[%s1 + $0x28] sm:$0xf]
  %v90 = vld [vmem:[%s1 + $0x2c] sm:$0xf]
  %v91 = vld [vmem:[%s1 + $0x30] sm:$0xf]
  %v92 = vld [vmem:[%s1 + $0x34] sm:$0xf]
  %v93 = vld [vmem:[%s1 + $0x38] sm:$0xf]
  %v94 = vld [vmem:[%s1 + $0x3c] sm:$0xf]
  %v95 = vld [vmem:[%s1 + $0x40] sm:$0xf]
  %v96 = vld [vmem:[%s1 + $0x44] sm:$0xf]
  %v97 = vld [vmem:[%s1 + $0x48] sm:$0x3]
  %v162 = vunpack.c.l.b16 %v15
  %v163 = vunpack.c.h.b16 %v15
  %v164 = vunpack.c.l.b16 %v16
  %v165 = vunpack.c.h.b16 %v16
  %v166 = vunpack.c.l.b16 %v17
  %v167 = vunpack.c.h.b16 %v17
  %v168 = vunpack.c.l.b16 %v18
  %v169 = vunpack.c.h.b16 %v18
  %v170 = vunpack.c.l.b16 %v19
  %v171 = vunpack.c.h.b16 %v19
  %v172 = vunpack.c.l.b16 %v20
  %v173 = vunpack.c.h.b16 %v20
  %v174 = vunpack.c.l.b16 %v21
  %v175 = vunpack.c.h.b16 %v21
  %v176 = vunpack.c.l.b16 %v22
  %v177 = vunpack.c.h.b16 %v22
  %v178 = vunpack.c.l.b16 %v23
  %v179 = vunpack.c.h.b16 %v23
  %v180 = vunpack.c.l.b16 %v24
  %v181 = vunpack.c.h.b16 %v24
  %v182 = vunpack.c.l.b16 %v25
  %v183 = vunpack.c.h.b16 %v25
  %v184 = vunpack.c.l.b16 %v26
  %v185 = vunpack.c.h.b16 %v26
  %v186 = vunpack.c.l.b16 %v27
  %v187 = vunpack.c.h.b16 %v27
  %v188 = vunpack.c.l.b16 %v28
  %v189 = vunpack.c.h.b16 %v28
  %v190 = vunpack.c.l.b16 %v29
  %v191 = vunpack.c.h.b16 %v29
  %v192 = vunpack.c.l.b16 %v30
  %v193 = vunpack.c.h.b16 %v30
  %v194 = vunpack.c.l.b16 %v31
  %v195 = vunpack.c.h.b16 %v31
  %v196 = vunpack.c.l.b16 %v32
  %v197 = vunpack.c.h.b16 %v32
  %v198 = vunpack.c.l.b16 %v33
  %v199 = vunpack.c.h.b16 %v33
  %v200 = vunpack.c.l.b16 %v34
  %v201 = vunpack.c.h.b16 %v34
  %v202 = vunpack.c.l.b16 %v35
  %v203 = vunpack.c.h.b16 %v35
  %v204 = vunpack.c.l.b16 %v36
  %v205 = vunpack.c.h.b16 %v36
  %v206 = vunpack.c.l.b16 %v37
  %v207 = vunpack.c.h.b16 %v37
  %v208 = vunpack.c.l.b16 %v38
  %v209 = vunpack.c.h.b16 %v38
  %v210 = vunpack.c.l.b16 %v39
  %v211 = vunpack.c.h.b16 %v39
  %v212 = vunpack.c.l.b16 %v40
  %v213 = vunpack.c.h.b16 %v40
  %v214 = vunpack.c.l.b16 %v41
  %v215 = vunpack.c.h.b16 %v41
  %v216 = vunpack.c.l.b16 %v42
  %v217 = vunpack.c.h.b16 %v42
  %v218 = vunpack.c.l.b16 %v43
  %v219 = vunpack.c.h.b16 %v43
  %v220 = vunpack.c.l.b16 %v44
  %v221 = vunpack.c.h.b16 %v44
  %v222 = vunpack.c.l.b16 %v45
  %v223 = vunpack.c.h.b16 %v45
  %v224 = vunpack.c.l.b16 %v46
  %v225 = vunpack.c.h.b16 %v46
  %v226 = vunpack.c.l.b16 %v47
  %v227 = vunpack.c.h.b16 %v47
  %v228 = vunpack.c.l.b16 %v48
  %v229 = vunpack.c.h.b16 %v48
  %v230 = vunpack.c.l.b16 %v49
  %v231 = vunpack.c.h.b16 %v49
  %v232 = vunpack.c.l.b16 %v50
  %v233 = vunpack.c.h.b16 %v50
  %v234 = vunpack.c.l.b16 %v51
  %v235 = vunpack.c.h.b16 %v51
  %v236 = vunpack.c.l.b16 %v52
  %v237 = vunpack.c.h.b16 %v52
  %v238 = vunpack.c.l.b16 %v53
  %v239 = vunpack.c.h.b16 %v53
  %v240 = vunpack.c.l.b16 %v54
  %v241 = vunpack.c.h.b16 %v54
  %v242 = vunpack.c.l.b16 %v55
  %v243 = vunpack.c.h.b16 %v55
  %v244 = vunpack.c.l.b16 %v56
  %v245 = vunpack.c.h.b16 %v56
  %v246 = vunpack.c.l.b16 %v57
  %v247 = vunpack.c.h.b16 %v57
  %v248 = vunpack.c.l.b16 %v58
  %v249 = vunpack.c.h.b16 %v58
  %v250 = vunpack.c.l.b16 %v59
  %v251 = vunpack.c.h.b16 %v59
  %v252 = vunpack.c.l.b16 %v60
  %v253 = vunpack.c.h.b16 %v60
  %v254 = vunpack.c.l.b16 %v61
  %v255 = vunpack.c.h.b16 %v61
  %v256 = vunpack.c.l.b16 %v62
  %v257 = vunpack.c.h.b16 %v62
  %v258 = vunpack.c.l.b16 %v63
  %v259 = vunpack.c.h.b16 %v63
  %v260 = vunpack.c.l.b16 %v64
  %v261 = vunpack.c.h.b16 %v64
  %v262 = vunpack.c.l.b16 %v65
  %v263 = vunpack.c.h.b16 %v65
  %v264 = vunpack.c.l.b16 %v66
  %v265 = vunpack.c.h.b16 %v66
  %v266 = vunpack.c.l.b16 %v67
  %v267 = vunpack.c.h.b16 %v67
  %v268 = vunpack.c.l.b16 %v68
  %v269 = vunpack.c.h.b16 %v68
  %v270 = vunpack.c.l.b16 %v69
  %v271 = vunpack.c.h.b16 %v69
  %v272 = vunpack.c.l.b16 %v70
  %v273 = vunpack.c.h.b16 %v70
  %v274 = vunpack.c.l.b16 %v71
  %v275 = vunpack.c.h.b16 %v71
  %v276 = vunpack.c.l.b16 %v72
  %v277 = vunpack.c.h.b16 %v72
  %v278 = vunpack.c.l.b16 %v73
  %v279 = vunpack.c.h.b16 %v73
  %v280 = vunpack.c.l.b16 %v74
  %v281 = vunpack.c.h.b16 %v74
  %v282 = vunpack.c.l.b16 %v75
  %v283 = vunpack.c.h.b16 %v75
  %v284 = vunpack.c.l.b16 %v76
  %v285 = vunpack.c.h.b16 %v76
  %v286 = vunpack.c.l.b16 %v77
  %v287 = vunpack.c.h.b16 %v77
  %v288 = vunpack.c.l.b16 %v78
  %v289 = vunpack.c.h.b16 %v78
  %v290 = vpack.c.b16 %v164, %v162
  %v291 = vpack.c.b16 %v165, %v163
  %v292 = vpack.c.b16 %v168, %v166
  %v293 = vpack.c.b16 %v169, %v167
  %v294 = vpack.c.b16 %v172, %v170
  %v295 = vpack.c.b16 %v173, %v171
  %v296 = vpack.c.b16 %v176, %v174
  %v297 = vpack.c.b16 %v177, %v175
  %v298 = vpack.c.b16 %v180, %v178
  %v299 = vpack.c.b16 %v181, %v179
  %v300 = vpack.c.b16 %v184, %v182
  %v301 = vpack.c.b16 %v185, %v183
  %v302 = vpack.c.b16 %v188, %v186
  %v303 = vpack.c.b16 %v189, %v187
  %v304 = vpack.c.b16 %v192, %v190
  %v305 = vpack.c.b16 %v193, %v191
  %v306 = vpack.c.b16 %v196, %v194
  %v307 = vpack.c.b16 %v197, %v195
  %v308 = vpack.c.b16 %v200, %v198
  %v309 = vpack.c.b16 %v201, %v199
  %v310 = vpack.c.b16 %v204, %v202
  %v311 = vpack.c.b16 %v205, %v203
  %v312 = vpack.c.b16 %v208, %v206
  %v313 = vpack.c.b16 %v209, %v207
  %v314 = vpack.c.b16 %v212, %v210
  %v315 = vpack.c.b16 %v213, %v211
  %v316 = vpack.c.b16 %v216, %v214
  %v317 = vpack.c.b16 %v217, %v215
  %v318 = vpack.c.b16 %v220, %v218
  %v319 = vpack.c.b16 %v221, %v219
  %v320 = vpack.c.b16 %v224, %v222
  %v321 = vpack.c.b16 %v225, %v223
  %v322 = vpack.c.b16 %v228, %v226
  %v323 = vpack.c.b16 %v229, %v227
  %v324 = vpack.c.b16 %v232, %v230
  %v325 = vpack.c.b16 %v233, %v231
  %v326 = vpack.c.b16 %v236, %v234
  %v327 = vpack.c.b16 %v237, %v235
  %v328 = vpack.c.b16 %v240, %v238
  %v329 = vpack.c.b16 %v241, %v239
  %v330 = vpack.c.b16 %v244, %v242
  %v331 = vpack.c.b16 %v245, %v243
  %v332 = vpack.c.b16 %v248, %v246
  %v333 = vpack.c.b16 %v249, %v247
  %v334 = vpack.c.b16 %v252, %v250
  %v335 = vpack.c.b16 %v253, %v251
  %v336 = vpack.c.b16 %v256, %v254
  %v337 = vpack.c.b16 %v257, %v255
  %v338 = vpack.c.b16 %v260, %v258
  %v339 = vpack.c.b16 %v261, %v259
  %v340 = vpack.c.b16 %v264, %v262
  %v341 = vpack.c.b16 %v265, %v263
  %v342 = vpack.c.b16 %v268, %v266
  %v343 = vpack.c.b16 %v269, %v267
  %v344 = vpack.c.b16 %v272, %v270
  %v345 = vpack.c.b16 %v273, %v271
  %v346 = vpack.c.b16 %v276, %v274
  %v347 = vpack.c.b16 %v277, %v275
  %v348 = vpack.c.b16 %v280, %v278
  %v349 = vpack.c.b16 %v281, %v279
  %v350 = vpack.c.b16 %v284, %v282
  %v351 = vpack.c.b16 %v285, %v283
  %v352 = vpack.c.b16 %v288, %v286
  %v353 = vpack.c.b16 %v289, %v287
  %v405 = vunpack.c.l.b16 %v79
  %v406 = vunpack.c.l.b16 %v80
  %v407 = vunpack.c.l.b16 %v81
  %v408 = vunpack.c.l.b16 %v82
  %v409 = vunpack.c.l.b16 %v83
  %v410 = vunpack.c.l.b16 %v84
  %v411 = vunpack.c.l.b16 %v85
  %v412 = vunpack.c.l.b16 %v86
  %v413 = vunpack.c.l.b16 %v87
  %v414 = vunpack.c.l.b16 %v88
  %v415 = vunpack.c.l.b16 %v89
  %v416 = vunpack.c.l.b16 %v90
  %v417 = vunpack.c.l.b16 %v91
  %v418 = vunpack.c.l.b16 %v92
  %v419 = vunpack.c.l.b16 %v93
  %v420 = vunpack.c.l.b16 %v94
  %v421 = vunpack.c.l.b16 %v95
  %v422 = vunpack.c.l.b16 %v96
  %v423 = vunpack.c.l.b16 %v97
  %v424 = vpack.c.b16 %v406, %v405
  %v425 = vpack.c.b16 %v408, %v407
  %v426 = vpack.c.b16 %v410, %v409
  %v427 = vpack.c.b16 %v412, %v411
  %v428 = vpack.c.b16 %v414, %v413
  %v429 = vpack.c.b16 %v416, %v415
  %v430 = vpack.c.b16 %v418, %v417
  %v431 = vpack.c.b16 %v420, %v419
  %v432 = vpack.c.b16 %v422, %v421
  %v433 = vpack.c.b16 %v423, %v423
  %vm443 = vcmask 154624
  %v445 = vsel %vm443, %v291, 0
  %v448 = vsel %vm443, %v293, 0
  %v451 = vsel %vm443, %v295, 0
  %v454 = vsel %vm443, %v297, 0
  %v457 = vsel %vm443, %v299, 0
  %v460 = vsel %vm443, %v301, 0
  %v463 = vsel %vm443, %v303, 0
  %v466 = vsel %vm443, %v305, 0
  %v469 = vsel %vm443, %v307, 0
  %v472 = vsel %vm443, %v309, 0
  %v475 = vsel %vm443, %v311, 0
  %v478 = vsel %vm443, %v313, 0
  %v481 = vsel %vm443, %v315, 0
  %v484 = vsel %vm443, %v317, 0
  %v487 = vsel %vm443, %v319, 0
  %v490 = vsel %vm443, %v321, 0
  %v493 = vsel %vm443, %v323, 0
  %v496 = vsel %vm443, %v325, 0
  %v499 = vsel %vm443, %v327, 0
  %v502 = vsel %vm443, %v329, 0
  %v505 = vsel %vm443, %v331, 0
  %v508 = vsel %vm443, %v333, 0
  %v511 = vsel %vm443, %v335, 0
  %v514 = vsel %vm443, %v337, 0
  %v517 = vsel %vm443, %v339, 0
  %v520 = vsel %vm443, %v341, 0
  %v523 = vsel %vm443, %v343, 0
  %v526 = vsel %vm443, %v345, 0
  %v529 = vsel %vm443, %v347, 0
  %v532 = vsel %vm443, %v349, 0
  %v535 = vsel %vm443, %v351, 0
  %v538 = vsel %vm443, %v353, 0
  %vm540 = vcmask 1040384
  %vm541 = vcmask 1041408
  %v542 = vsel %vm540, 4294967295, 65535
  %v543 = vsel %vm541, %v542, 0
  %v545 = vand.u32 %v433, %v543
  %547 = vmatpush.bf16.msra.mxu0 %v431
  %548 = vmatpush.bf16.msra.mxu0 %v430
  %549 = vmatpush.bf16.msra.mxu0 %v429
  %550 = vmatpush.bf16.msra.mxu0 %v428
  %551 = vmatpush.bf16.msra.mxu0 %v427
  %552 = vmatpush.bf16.msra.mxu0 %v426
  %553 = vmatpush.bf16.msra.mxu0 %v425
  %554 = vmatpush.bf16.msra.mxu0 %v424
  %555 = vmatmul.bf16.gmra.mxu0 %v290
  %v556 = vpop.f32.mrf.mxu0
  %v557 = vadd.f32 0.0, %v556
  %v558 = vpop.f32.mrf.mxu0
  %v559 = vadd.f32 0.0, %v558
  %560 = vmatmul.bf16.gmra.mxu0 %v292
  %v561 = vpop.f32.mrf.mxu0
  %v562 = vadd.f32 0.0, %v561
  %v563 = vpop.f32.mrf.mxu0
  %v564 = vadd.f32 0.0, %v563
  %565 = vmatmul.bf16.gmra.mxu0 %v294
  %v566 = vpop.f32.mrf.mxu0
  %v567 = vadd.f32 0.0, %v566
  %v568 = vpop.f32.mrf.mxu0
  %v569 = vadd.f32 0.0, %v568
  %570 = vmatmul.bf16.gmra.mxu0 %v296
  %v571 = vpop.f32.mrf.mxu0
  %v572 = vadd.f32 0.0, %v571
  %v573 = vpop.f32.mrf.mxu0
  %v574 = vadd.f32 0.0, %v573
  %575 = vmatmul.bf16.gmra.mxu0 %v298
  %v576 = vpop.f32.mrf.mxu0
  %v577 = vadd.f32 0.0, %v576
  %v578 = vpop.f32.mrf.mxu0
  %v579 = vadd.f32 0.0, %v578
  %580 = vmatmul.bf16.gmra.mxu0 %v300
  %v581 = vpop.f32.mrf.mxu0
  %v582 = vadd.f32 0.0, %v581
  %v583 = vpop.f32.mrf.mxu0
  %v584 = vadd.f32 0.0, %v583
  %585 = vmatmul.bf16.gmra.mxu0 %v302
  %v586 = vpop.f32.mrf.mxu0
  %v587 = vadd.f32 0.0, %v586
  %v588 = vpop.f32.mrf.mxu0
  %v589 = vadd.f32 0.0, %v588
  %590 = vmatmul.bf16.gmra.mxu0 %v304
  %v591 = vpop.f32.mrf.mxu0
  %v592 = vadd.f32 0.0, %v591
  %v593 = vpop.f32.mrf.mxu0
  %v594 = vadd.f32 0.0, %v593
  %595 = vmatmul.bf16.gmra.mxu0 %v306
  %v596 = vpop.f32.mrf.mxu0
  %v597 = vadd.f32 0.0, %v596
  %v598 = vpop.f32.mrf.mxu0
  %v599 = vadd.f32 0.0, %v598
  %600 = vmatmul.bf16.gmra.mxu0 %v308
  %v601 = vpop.f32.mrf.mxu0
  %v602 = vadd.f32 0.0, %v601
  %v603 = vpop.f32.mrf.mxu0
  %v604 = vadd.f32 0.0, %v603
  %605 = vmatmul.bf16.gmra.mxu0 %v310
  %v606 = vpop.f32.mrf.mxu0
  %v607 = vadd.f32 0.0, %v606
  %v608 = vpop.f32.mrf.mxu0
  %v609 = vadd.f32 0.0, %v608
  %610 = vmatmul.bf16.gmra.mxu0 %v312
  %v611 = vpop.f32.mrf.mxu0
  %v612 = vadd.f32 0.0, %v611
  %v613 = vpop.f32.mrf.mxu0
  %v614 = vadd.f32 0.0, %v613
  %615 = vmatmul.bf16.gmra.mxu0 %v314
  %v616 = vpop.f32.mrf.mxu0
  %v617 = vadd.f32 0.0, %v616
  %v618 = vpop.f32.mrf.mxu0
  %v619 = vadd.f32 0.0, %v618
  %620 = vmatmul.bf16.gmra.mxu0 %v316
  %v621 = vpop.f32.mrf.mxu0
  %v622 = vadd.f32 0.0, %v621
  %v623 = vpop.f32.mrf.mxu0
  %v624 = vadd.f32 0.0, %v623
  %625 = vmatmul.bf16.gmra.mxu0 %v318
  %v626 = vpop.f32.mrf.mxu0
  %v627 = vadd.f32 0.0, %v626
  %v628 = vpop.f32.mrf.mxu0
  %v629 = vadd.f32 0.0, %v628
  %630 = vmatmul.bf16.gmra.mxu0 %v320
  %v631 = vpop.f32.mrf.mxu0
  %v632 = vadd.f32 0.0, %v631
  %v633 = vpop.f32.mrf.mxu0
  %v634 = vadd.f32 0.0, %v633
  %635 = vmatmul.bf16.gmra.mxu0 %v322
  %v636 = vpop.f32.mrf.mxu0
  %v637 = vadd.f32 0.0, %v636
  %v638 = vpop.f32.mrf.mxu0
  %v639 = vadd.f32 0.0, %v638
  %640 = vmatmul.bf16.gmra.mxu0 %v324
  %v641 = vpop.f32.mrf.mxu0
  %v642 = vadd.f32 0.0, %v641
  %v643 = vpop.f32.mrf.mxu0
  %v644 = vadd.f32 0.0, %v643
  %645 = vmatmul.bf16.gmra.mxu0 %v326
  %v646 = vpop.f32.mrf.mxu0
  %v647 = vadd.f32 0.0, %v646
  %v648 = vpop.f32.mrf.mxu0
  %v649 = vadd.f32 0.0, %v648
  %650 = vmatmul.bf16.gmra.mxu0 %v328
  %v651 = vpop.f32.mrf.mxu0
  %v652 = vadd.f32 0.0, %v651
  %v653 = vpop.f32.mrf.mxu0
  %v654 = vadd.f32 0.0, %v653
  %655 = vmatmul.bf16.gmra.mxu0 %v330
  %v656 = vpop.f32.mrf.mxu0
  %v657 = vadd.f32 0.0, %v656
  %v658 = vpop.f32.mrf.mxu0
  %v659 = vadd.f32 0.0, %v658
  %660 = vmatmul.bf16.gmra.mxu0 %v332
  %v661 = vpop.f32.mrf.mxu0
  %v662 = vadd.f32 0.0, %v661
  %v663 = vpop.f32.mrf.mxu0
  %v664 = vadd.f32 0.0, %v663
  %665 = vmatmul.bf16.gmra.mxu0 %v334
  %v666 = vpop.f32.mrf.mxu0
  %v667 = vadd.f32 0.0, %v666
  %v668 = vpop.f32.mrf.mxu0
  %v669 = vadd.f32 0.0, %v668
  %670 = vmatmul.bf16.gmra.mxu0 %v336
  %v671 = vpop.f32.mrf.mxu0
  %v672 = vadd.f32 0.0, %v671
  %v673 = vpop.f32.mrf.mxu0
  %v674 = vadd.f32 0.0, %v673
  %675 = vmatmul.bf16.gmra.mxu0 %v338
  %v676 = vpop.f32.mrf.mxu0
  %v677 = vadd.f32 0.0, %v676
  %v678 = vpop.f32.mrf.mxu0
  %v679 = vadd.f32 0.0, %v678
  %680 = vmatmul.bf16.gmra.mxu0 %v340
  %v681 = vpop.f32.mrf.mxu0
  %v682 = vadd.f32 0.0, %v681
  %v683 = vpop.f32.mrf.mxu0
  %v684 = vadd.f32 0.0, %v683
  %685 = vmatmul.bf16.gmra.mxu0 %v342
  %v686 = vpop.f32.mrf.mxu0
  %v687 = vadd.f32 0.0, %v686
  %v688 = vpop.f32.mrf.mxu0
  %v689 = vadd.f32 0.0, %v688
  %690 = vmatmul.bf16.gmra.mxu0 %v344
  %v691 = vpop.f32.mrf.mxu0
  %v692 = vadd.f32 0.0, %v691
  %v693 = vpop.f32.mrf.mxu0
  %v694 = vadd.f32 0.0, %v693
  %695 = vmatmul.bf16.gmra.mxu0 %v346
  %v696 = vpop.f32.mrf.mxu0
  %v697 = vadd.f32 0.0, %v696
  %v698 = vpop.f32.mrf.mxu0
  %v699 = vadd.f32 0.0, %v698
  %700 = vmatmul.bf16.gmra.mxu0 %v348
  %v701 = vpop.f32.mrf.mxu0
  %v702 = vadd.f32 0.0, %v701
  %v703 = vpop.f32.mrf.mxu0
  %v704 = vadd.f32 0.0, %v703
  %705 = vmatmul.bf16.gmra.mxu0 %v350
  %v706 = vpop.f32.mrf.mxu0
  %v707 = vadd.f32 0.0, %v706
  %v708 = vpop.f32.mrf.mxu0
  %v709 = vadd.f32 0.0, %v708
  %710 = vmatmul.bf16.gmra.mxu0 %v352
  %v711 = vpop.f32.mrf.mxu0
  %v712 = vadd.f32 0.0, %v711
  %v713 = vpop.f32.mrf.mxu0
  %v714 = vadd.f32 0.0, %v713
  %715 = vdwg.mxu0
  %716 = vmatpush.bf16.msra.mxu0 0
  %717 = vmatpush.bf16.msra.mxu0 0
  %718 = vmatpush.bf16.msra.mxu0 0
  %719 = vmatpush.bf16.msra.mxu0 0
  %720 = vmatpush.bf16.msra.mxu0 0
  %721 = vmatpush.bf16.msra.mxu0 0
  %722 = vmatpush.bf16.msra.mxu0 %v545
  %723 = vmatpush.bf16.msra.mxu0 %v432
  %724 = vmatmul.bf16.gmra.mxu0 %v445
  %v725 = vpop.f32.mrf.mxu0
  %v726 = vadd.f32 %v557, %v725
  %v727 = vpop.f32.mrf.mxu0
  %v728 = vadd.f32 %v559, %v727
  %729 = vmatmul.bf16.gmra.mxu0 %v448
  %v730 = vpop.f32.mrf.mxu0
  %v731 = vadd.f32 %v562, %v730
  %v732 = vpop.f32.mrf.mxu0
  %v733 = vadd.f32 %v564, %v732
  %734 = vmatmul.bf16.gmra.mxu0 %v451
  %v735 = vpop.f32.mrf.mxu0
  %v736 = vadd.f32 %v567, %v735
  %v737 = vpop.f32.mrf.mxu0
  %v738 = vadd.f32 %v569, %v737
  %739 = vmatmul.bf16.gmra.mxu0 %v454
  %v740 = vpop.f32.mrf.mxu0
  %v741 = vadd.f32 %v572, %v740
  %v742 = vpop.f32.mrf.mxu0
  %v743 = vadd.f32 %v574, %v742
  %744 = vmatmul.bf16.gmra.mxu0 %v457
  %v745 = vpop.f32.mrf.mxu0
  %v746 = vadd.f32 %v577, %v745
  %v747 = vpop.f32.mrf.mxu0
  %v748 = vadd.f32 %v579, %v747
  %749 = vmatmul.bf16.gmra.mxu0 %v460
  %v750 = vpop.f32.mrf.mxu0
  %v751 = vadd.f32 %v582, %v750
  %v752 = vpop.f32.mrf.mxu0
  %v753 = vadd.f32 %v584, %v752
  %754 = vmatmul.bf16.gmra.mxu0 %v463
  %v755 = vpop.f32.mrf.mxu0
  %v756 = vadd.f32 %v587, %v755
  %v757 = vpop.f32.mrf.mxu0
  %v758 = vadd.f32 %v589, %v757
  %759 = vmatmul.bf16.gmra.mxu0 %v466
  %v760 = vpop.f32.mrf.mxu0
  %v761 = vadd.f32 %v592, %v760
  %v762 = vpop.f32.mrf.mxu0
  %v763 = vadd.f32 %v594, %v762
  %764 = vmatmul.bf16.gmra.mxu0 %v469
  %v765 = vpop.f32.mrf.mxu0
  %v766 = vadd.f32 %v597, %v765
  %v767 = vpop.f32.mrf.mxu0
  %v768 = vadd.f32 %v599, %v767
  %769 = vmatmul.bf16.gmra.mxu0 %v472
  %v770 = vpop.f32.mrf.mxu0
  %v771 = vadd.f32 %v602, %v770
  %v772 = vpop.f32.mrf.mxu0
  %v773 = vadd.f32 %v604, %v772
  %774 = vmatmul.bf16.gmra.mxu0 %v475
  %v775 = vpop.f32.mrf.mxu0
  %v776 = vadd.f32 %v607, %v775
  %v777 = vpop.f32.mrf.mxu0
  %v778 = vadd.f32 %v609, %v777
  %779 = vmatmul.bf16.gmra.mxu0 %v478
  %v780 = vpop.f32.mrf.mxu0
  %v781 = vadd.f32 %v612, %v780
  %v782 = vpop.f32.mrf.mxu0
  %v783 = vadd.f32 %v614, %v782
  %784 = vmatmul.bf16.gmra.mxu0 %v481
  %v785 = vpop.f32.mrf.mxu0
  %v786 = vadd.f32 %v617, %v785
  %v787 = vpop.f32.mrf.mxu0
  %v788 = vadd.f32 %v619, %v787
  %789 = vmatmul.bf16.gmra.mxu0 %v484
  %v790 = vpop.f32.mrf.mxu0
  %v791 = vadd.f32 %v622, %v790
  %v792 = vpop.f32.mrf.mxu0
  %v793 = vadd.f32 %v624, %v792
  %794 = vmatmul.bf16.gmra.mxu0 %v487
  %v795 = vpop.f32.mrf.mxu0
  %v796 = vadd.f32 %v627, %v795
  %v797 = vpop.f32.mrf.mxu0
  %v798 = vadd.f32 %v629, %v797
  %799 = vmatmul.bf16.gmra.mxu0 %v490
  %v800 = vpop.f32.mrf.mxu0
  %v801 = vadd.f32 %v632, %v800
  %v802 = vpop.f32.mrf.mxu0
  %v803 = vadd.f32 %v634, %v802
  %804 = vmatmul.bf16.gmra.mxu0 %v493
  %v805 = vpop.f32.mrf.mxu0
  %v806 = vadd.f32 %v637, %v805
  %v807 = vpop.f32.mrf.mxu0
  %v808 = vadd.f32 %v639, %v807
  %809 = vmatmul.bf16.gmra.mxu0 %v496
  %v810 = vpop.f32.mrf.mxu0
  %v811 = vadd.f32 %v642, %v810
  %v812 = vpop.f32.mrf.mxu0
  %v813 = vadd.f32 %v644, %v812
  %814 = vmatmul.bf16.gmra.mxu0 %v499
  %v815 = vpop.f32.mrf.mxu0
  %v816 = vadd.f32 %v647, %v815
  %v817 = vpop.f32.mrf.mxu0
  %v818 = vadd.f32 %v649, %v817
  %819 = vmatmul.bf16.gmra.mxu0 %v502
  %v820 = vpop.f32.mrf.mxu0
  %v821 = vadd.f32 %v652, %v820
  %v822 = vpop.f32.mrf.mxu0
  %v823 = vadd.f32 %v654, %v822
  %824 = vmatmul.bf16.gmra.mxu0 %v505
  %v825 = vpop.f32.mrf.mxu0
  %v826 = vadd.f32 %v657, %v825
  %v827 = vpop.f32.mrf.mxu0
  %v828 = vadd.f32 %v659, %v827
  %829 = vmatmul.bf16.gmra.mxu0 %v508
  %v830 = vpop.f32.mrf.mxu0
  %v831 = vadd.f32 %v662, %v830
  %v832 = vpop.f32.mrf.mxu0
  %v833 = vadd.f32 %v664, %v832
  %834 = vmatmul.bf16.gmra.mxu0 %v511
  %v835 = vpop.f32.mrf.mxu0
  %v836 = vadd.f32 %v667, %v835
  %v837 = vpop.f32.mrf.mxu0
  %v838 = vadd.f32 %v669, %v837
  %839 = vmatmul.bf16.gmra.mxu0 %v514
  %v840 = vpop.f32.mrf.mxu0
  %v841 = vadd.f32 %v672, %v840
  %v842 = vpop.f32.mrf.mxu0
  %v843 = vadd.f32 %v674, %v842
  %844 = vmatmul.bf16.gmra.mxu0 %v517
  %v845 = vpop.f32.mrf.mxu0
  %v846 = vadd.f32 %v677, %v845
  %v847 = vpop.f32.mrf.mxu0
  %v848 = vadd.f32 %v679, %v847
  %849 = vmatmul.bf16.gmra.mxu0 %v520
  %v850 = vpop.f32.mrf.mxu0
  %v851 = vadd.f32 %v682, %v850
  %v852 = vpop.f32.mrf.mxu0
  %v853 = vadd.f32 %v684, %v852
  %854 = vmatmul.bf16.gmra.mxu0 %v523
  %v855 = vpop.f32.mrf.mxu0
  %v856 = vadd.f32 %v687, %v855
  %v857 = vpop.f32.mrf.mxu0
  %v858 = vadd.f32 %v689, %v857
  %859 = vmatmul.bf16.gmra.mxu0 %v526
  %v860 = vpop.f32.mrf.mxu0
  %v861 = vadd.f32 %v692, %v860
  %v862 = vpop.f32.mrf.mxu0
  %v863 = vadd.f32 %v694, %v862
  %864 = vmatmul.bf16.gmra.mxu0 %v529
  %v865 = vpop.f32.mrf.mxu0
  %v866 = vadd.f32 %v697, %v865
  %v867 = vpop.f32.mrf.mxu0
  %v868 = vadd.f32 %v699, %v867
  %869 = vmatmul.bf16.gmra.mxu0 %v532
  %v870 = vpop.f32.mrf.mxu0
  %v871 = vadd.f32 %v702, %v870
  %v872 = vpop.f32.mrf.mxu0
  %v873 = vadd.f32 %v704, %v872
  %874 = vmatmul.bf16.gmra.mxu0 %v535
  %v875 = vpop.f32.mrf.mxu0
  %v876 = vadd.f32 %v707, %v875
  %v877 = vpop.f32.mrf.mxu0
  %v878 = vadd.f32 %v709, %v877
  %879 = vmatmul.bf16.gmra.mxu0 %v538
  %v880 = vpop.f32.mrf.mxu0
  %v881 = vadd.f32 %v712, %v880
  %v882 = vpop.f32.mrf.mxu0
  %v883 = vadd.f32 %v714, %v882
  %884 = vdwg.mxu0
  %vm885 = vcmask 523264
  %886 = vst.msk [vmem:[%s2] sm:$0xff] %vm885, %v726
  %887 = vst.msk [vmem:[%s2 + $0x8] sm:$0xff] %vm885, %v728
  %888 = vst.msk [vmem:[%s2 + $0x10] sm:$0xff] %vm885, %v731
  %889 = vst.msk [vmem:[%s2 + $0x18] sm:$0xff] %vm885, %v733
  %890 = vst.msk [vmem:[%s2 + $0x20] sm:$0xff] %vm885, %v736
  %891 = vst.msk [vmem:[%s2 + $0x28] sm:$0xff] %vm885, %v738
  %892 = vst.msk [vmem:[%s2 + $0x30] sm:$0xff] %vm885, %v741
  %893 = vst.msk [vmem:[%s2 + $0x38] sm:$0xff] %vm885, %v743
  %894 = vst.msk [vmem:[%s2 + $0x40] sm:$0xff] %vm885, %v746
  %895 = vst.msk [vmem:[%s2 + $0x48] sm:$0xff] %vm885, %v748
  %896 = vst.msk [vmem:[%s2 + $0x50] sm:$0xff] %vm885, %v751
  %897 = vst.msk [vmem:[%s2 + $0x58] sm:$0xff] %vm885, %v753
  %898 = vst.msk [vmem:[%s2 + $0x60] sm:$0xff] %vm885, %v756
  %899 = vst.msk [vmem:[%s2 + $0x68] sm:$0xff] %vm885, %v758
  %900 = vst.msk [vmem:[%s2 + $0x70] sm:$0xff] %vm885, %v761
  %901 = vst.msk [vmem:[%s2 + $0x78] sm:$0xff] %vm885, %v763
  %902 = vst.msk [vmem:[%s2 + $0x80] sm:$0xff] %vm885, %v766
  %903 = vst.msk [vmem:[%s2 + $0x88] sm:$0xff] %vm885, %v768
  %904 = vst.msk [vmem:[%s2 + $0x90] sm:$0xff] %vm885, %v771
  %905 = vst.msk [vmem:[%s2 + $0x98] sm:$0xff] %vm885, %v773
  %906 = vst.msk [vmem:[%s2 + $0xa0] sm:$0xff] %vm885, %v776
  %907 = vst.msk [vmem:[%s2 + $0xa8] sm:$0xff] %vm885, %v778
  %908 = vst.msk [vmem:[%s2 + $0xb0] sm:$0xff] %vm885, %v781
  %909 = vst.msk [vmem:[%s2 + $0xb8] sm:$0xff] %vm885, %v783
  %910 = vst.msk [vmem:[%s2 + $0xc0] sm:$0xff] %vm885, %v786
  %911 = vst.msk [vmem:[%s2 + $0xc8] sm:$0xff] %vm885, %v788
  %912 = vst.msk [vmem:[%s2 + $0xd0] sm:$0xff] %vm885, %v791
  %913 = vst.msk [vmem:[%s2 + $0xd8] sm:$0xff] %vm885, %v793
  %914 = vst.msk [vmem:[%s2 + $0xe0] sm:$0xff] %vm885, %v796
  %915 = vst.msk [vmem:[%s2 + $0xe8] sm:$0xff] %vm885, %v798
  %916 = vst.msk [vmem:[%s2 + $0xf0] sm:$0xff] %vm885, %v801
  %917 = vst.msk [vmem:[%s2 + $0xf8] sm:$0xff] %vm885, %v803
  %918 = vst.msk [vmem:[%s2 + $0x100] sm:$0xff] %vm885, %v806
  %919 = vst.msk [vmem:[%s2 + $0x108] sm:$0xff] %vm885, %v808
  %920 = vst.msk [vmem:[%s2 + $0x110] sm:$0xff] %vm885, %v811
  %921 = vst.msk [vmem:[%s2 + $0x118] sm:$0xff] %vm885, %v813
  %922 = vst.msk [vmem:[%s2 + $0x120] sm:$0xff] %vm885, %v816
  %923 = vst.msk [vmem:[%s2 + $0x128] sm:$0xff] %vm885, %v818
  %924 = vst.msk [vmem:[%s2 + $0x130] sm:$0xff] %vm885, %v821
  %925 = vst.msk [vmem:[%s2 + $0x138] sm:$0xff] %vm885, %v823
  %926 = vst.msk [vmem:[%s2 + $0x140] sm:$0xff] %vm885, %v826
  %927 = vst.msk [vmem:[%s2 + $0x148] sm:$0xff] %vm885, %v828
  %928 = vst.msk [vmem:[%s2 + $0x150] sm:$0xff] %vm885, %v831
  %929 = vst.msk [vmem:[%s2 + $0x158] sm:$0xff] %vm885, %v833
  %930 = vst.msk [vmem:[%s2 + $0x160] sm:$0xff] %vm885, %v836
  %931 = vst.msk [vmem:[%s2 + $0x168] sm:$0xff] %vm885, %v838
  %932 = vst.msk [vmem:[%s2 + $0x170] sm:$0xff] %vm885, %v841
  %933 = vst.msk [vmem:[%s2 + $0x178] sm:$0xff] %vm885, %v843
  %934 = vst.msk [vmem:[%s2 + $0x180] sm:$0xff] %vm885, %v846
  %935 = vst.msk [vmem:[%s2 + $0x188] sm:$0xff] %vm885, %v848
  %936 = vst.msk [vmem:[%s2 + $0x190] sm:$0xff] %vm885, %v851
  %937 = vst.msk [vmem:[%s2 + $0x198] sm:$0xff] %vm885, %v853
  %938 = vst.msk [vmem:[%s2 + $0x1a0] sm:$0xff] %vm885, %v856
  %939 = vst.msk [vmem:[%s2 + $0x1a8] sm:$0xff] %vm885, %v858
  %940 = vst.msk [vmem:[%s2 + $0x1b0] sm:$0xff] %vm885, %v861
  %941 = vst.msk [vmem:[%s2 + $0x1b8] sm:$0xff] %vm885, %v863
  %942 = vst.msk [vmem:[%s2 + $0x1c0] sm:$0xff] %vm885, %v866
  %943 = vst.msk [vmem:[%s2 + $0x1c8] sm:$0xff] %vm885, %v868
  %944 = vst.msk [vmem:[%s2 + $0x1d0] sm:$0xff] %vm885, %v871
  %945 = vst.msk [vmem:[%s2 + $0x1d8] sm:$0xff] %vm885, %v873
  %946 = vst.msk [vmem:[%s2 + $0x1e0] sm:$0xff] %vm885, %v876
  %947 = vst.msk [vmem:[%s2 + $0x1e8] sm:$0xff] %vm885, %v878
  %948 = vst.msk [vmem:[%s2 + $0x1f0] sm:$0xff] %vm885, %v881
  %949 = vst.msk [vmem:[%s2 + $0x1f8] sm:$0xff] %vm885, %v883
  %v950 = vsel %vm885, %v726, 0.0
  %v951 = vsel %vm885, %v728, 0.0
  %v952 = vadd.f32 %v950, %v951
  %v953 = vsel %vm885, %v731, 0.0
  %v954 = vadd.f32 %v952, %v953
  %v955 = vsel %vm885, %v733, 0.0
  %v956 = vadd.f32 %v954, %v955
  %v957 = vsel %vm885, %v736, 0.0
  %v958 = vadd.f32 %v956, %v957
  %v959 = vsel %vm885, %v738, 0.0
  %v960 = vadd.f32 %v958, %v959
  %v961 = vsel %vm885, %v741, 0.0
  %v962 = vadd.f32 %v960, %v961
  %v963 = vsel %vm885, %v743, 0.0
  %v964 = vadd.f32 %v962, %v963
  %v965 = vsel %vm885, %v746, 0.0
  %v966 = vadd.f32 %v964, %v965
  %v967 = vsel %vm885, %v748, 0.0
  %v968 = vadd.f32 %v966, %v967
  %v969 = vsel %vm885, %v751, 0.0
  %v970 = vadd.f32 %v968, %v969
  %v971 = vsel %vm885, %v753, 0.0
  %v972 = vadd.f32 %v970, %v971
  %v973 = vsel %vm885, %v756, 0.0
  %v974 = vadd.f32 %v972, %v973
  %v975 = vsel %vm885, %v758, 0.0
  %v976 = vadd.f32 %v974, %v975
  %v977 = vsel %vm885, %v761, 0.0
  %v978 = vadd.f32 %v976, %v977
  %v979 = vsel %vm885, %v763, 0.0
  %v980 = vadd.f32 %v978, %v979
  %v981 = vsel %vm885, %v766, 0.0
  %v982 = vadd.f32 %v980, %v981
  %v983 = vsel %vm885, %v768, 0.0
  %v984 = vadd.f32 %v982, %v983
  %v985 = vsel %vm885, %v771, 0.0
  %v986 = vadd.f32 %v984, %v985
  %v987 = vsel %vm885, %v773, 0.0
  %v988 = vadd.f32 %v986, %v987
  %v989 = vsel %vm885, %v776, 0.0
  %v990 = vadd.f32 %v988, %v989
  %v991 = vsel %vm885, %v778, 0.0
  %v992 = vadd.f32 %v990, %v991
  %v993 = vsel %vm885, %v781, 0.0
  %v994 = vadd.f32 %v992, %v993
  %v995 = vsel %vm885, %v783, 0.0
  %v996 = vadd.f32 %v994, %v995
  %v997 = vsel %vm885, %v786, 0.0
  %v998 = vadd.f32 %v996, %v997
  %v999 = vsel %vm885, %v788, 0.0
  %v1000 = vadd.f32 %v998, %v999
  %v1001 = vsel %vm885, %v791, 0.0
  %v1002 = vadd.f32 %v1000, %v1001
  %v1003 = vsel %vm885, %v793, 0.0
  %v1004 = vadd.f32 %v1002, %v1003
  %v1005 = vsel %vm885, %v796, 0.0
  %v1006 = vadd.f32 %v1004, %v1005
  %v1007 = vsel %vm885, %v798, 0.0
  %v1008 = vadd.f32 %v1006, %v1007
  %v1009 = vsel %vm885, %v801, 0.0
  %v1010 = vadd.f32 %v1008, %v1009
  %v1011 = vsel %vm885, %v803, 0.0
  %v1012 = vadd.f32 %v1010, %v1011
  %v1013 = vsel %vm885, %v806, 0.0
  %v1014 = vadd.f32 %v1012, %v1013
  %v1015 = vsel %vm885, %v808, 0.0
  %v1016 = vadd.f32 %v1014, %v1015
  %v1017 = vsel %vm885, %v811, 0.0
  %v1018 = vadd.f32 %v1016, %v1017
  %v1019 = vsel %vm885, %v813, 0.0
  %v1020 = vadd.f32 %v1018, %v1019
  %v1021 = vsel %vm885, %v816, 0.0
  %v1022 = vadd.f32 %v1020, %v1021
  %v1023 = vsel %vm885, %v818, 0.0
  %v1024 = vadd.f32 %v1022, %v1023
  %v1025 = vsel %vm885, %v821, 0.0
  %v1026 = vadd.f32 %v1024, %v1025
  %v1027 = vsel %vm885, %v823, 0.0
  %v1028 = vadd.f32 %v1026, %v1027
  %v1029 = vsel %vm885, %v826, 0.0
  %v1030 = vadd.f32 %v1028, %v1029
  %v1031 = vsel %vm885, %v828, 0.0
  %v1032 = vadd.f32 %v1030, %v1031
  %v1033 = vsel %vm885, %v831, 0.0
  %v1034 = vadd.f32 %v1032, %v1033
  %v1035 = vsel %vm885, %v833, 0.0
  %v1036 = vadd.f32 %v1034, %v1035
  %v1037 = vsel %vm885, %v836, 0.0
  %v1038 = vadd.f32 %v1036, %v1037
  %v1039 = vsel %vm885, %v838, 0.0
  %v1040 = vadd.f32 %v1038, %v1039
  %v1041 = vsel %vm885, %v841, 0.0
  %v1042 = vadd.f32 %v1040, %v1041
  %v1043 = vsel %vm885, %v843, 0.0
  %v1044 = vadd.f32 %v1042, %v1043
  %v1045 = vsel %vm885, %v846, 0.0
  %v1046 = vadd.f32 %v1044, %v1045
  %v1047 = vsel %vm885, %v848, 0.0
  %v1048 = vadd.f32 %v1046, %v1047
  %v1049 = vsel %vm885, %v851, 0.0
  %v1050 = vadd.f32 %v1048, %v1049
  %v1051 = vsel %vm885, %v853, 0.0
  %v1052 = vadd.f32 %v1050, %v1051
  %v1053 = vsel %vm885, %v856, 0.0
  %v1054 = vadd.f32 %v1052, %v1053
  %v1055 = vsel %vm885, %v858, 0.0
  %v1056 = vadd.f32 %v1054, %v1055
  %v1057 = vsel %vm885, %v861, 0.0
  %v1058 = vadd.f32 %v1056, %v1057
  %v1059 = vsel %vm885, %v863, 0.0
  %v1060 = vadd.f32 %v1058, %v1059
  %v1061 = vsel %vm885, %v866, 0.0
  %v1062 = vadd.f32 %v1060, %v1061
  %v1063 = vsel %vm885, %v868, 0.0
  %v1064 = vadd.f32 %v1062, %v1063
  %v1065 = vsel %vm885, %v871, 0.0
  %v1066 = vadd.f32 %v1064, %v1065
  %v1067 = vsel %vm885, %v873, 0.0
  %v1068 = vadd.f32 %v1066, %v1067
  %v1069 = vsel %vm885, %v876, 0.0
  %v1070 = vadd.f32 %v1068, %v1069
  %v1071 = vsel %vm885, %v878, 0.0
  %v1072 = vadd.f32 %v1070, %v1071
  %v1073 = vsel %vm885, %v881, 0.0
  %v1074 = vadd.f32 %v1072, %v1073
  %v1075 = vsel %vm885, %v883, 0.0
  %v1076 = vadd.f32 %v1074, %v1075
  %v1077 = vrot.slane %v1076, 4
  %v1078 = vadd.f32 %v1076, %v1077
  %v1079 = vrot.slane %v1078, 2
  %v1080 = vadd.f32 %v1078, %v1079
  %v1081 = vrot.slane %v1080, 1
  %v1082 = vadd.f32 %v1080, %v1081
  %vm1083 = vcmask 516096
  %1084 = vst.msk [vmem:[%s3] sm:$0x1] %vm1083, %v1082
  %v1085 = vmul.f32 %v726, %v726
  %v1086 = vmul.f32 %v728, %v728
  %v1087 = vmul.f32 %v731, %v731
  %v1088 = vmul.f32 %v733, %v733
  %v1089 = vmul.f32 %v736, %v736
  %v1090 = vmul.f32 %v738, %v738
  %v1091 = vmul.f32 %v741, %v741
  %v1092 = vmul.f32 %v743, %v743
  %v1093 = vmul.f32 %v746, %v746
  %v1094 = vmul.f32 %v748, %v748
  %v1095 = vmul.f32 %v751, %v751
  %v1096 = vmul.f32 %v753, %v753
  %v1097 = vmul.f32 %v756, %v756
  %v1098 = vmul.f32 %v758, %v758
  %v1099 = vmul.f32 %v761, %v761
  %v1100 = vmul.f32 %v763, %v763
  %v1101 = vmul.f32 %v766, %v766
  %v1102 = vmul.f32 %v768, %v768
  %v1103 = vmul.f32 %v771, %v771
  %v1104 = vmul.f32 %v773, %v773
  %v1105 = vmul.f32 %v776, %v776
  %v1106 = vmul.f32 %v778, %v778
  %v1107 = vmul.f32 %v781, %v781
  %v1108 = vmul.f32 %v783, %v783
  %v1109 = vmul.f32 %v786, %v786
  %v1110 = vmul.f32 %v788, %v788
  %v1111 = vmul.f32 %v791, %v791
  %v1112 = vmul.f32 %v793, %v793
  %v1113 = vmul.f32 %v796, %v796
  %v1114 = vmul.f32 %v798, %v798
  %v1115 = vmul.f32 %v801, %v801
  %v1116 = vmul.f32 %v803, %v803
  %v1117 = vmul.f32 %v806, %v806
  %v1118 = vmul.f32 %v808, %v808
  %v1119 = vmul.f32 %v811, %v811
  %v1120 = vmul.f32 %v813, %v813
  %v1121 = vmul.f32 %v816, %v816
  %v1122 = vmul.f32 %v818, %v818
  %v1123 = vmul.f32 %v821, %v821
  %v1124 = vmul.f32 %v823, %v823
  %v1125 = vmul.f32 %v826, %v826
  %v1126 = vmul.f32 %v828, %v828
  %v1127 = vmul.f32 %v831, %v831
  %v1128 = vmul.f32 %v833, %v833
  %v1129 = vmul.f32 %v836, %v836
  %v1130 = vmul.f32 %v838, %v838
  %v1131 = vmul.f32 %v841, %v841
  %v1132 = vmul.f32 %v843, %v843
  %v1133 = vmul.f32 %v846, %v846
  %v1134 = vmul.f32 %v848, %v848
  %v1135 = vmul.f32 %v851, %v851
  %v1136 = vmul.f32 %v853, %v853
  %v1137 = vmul.f32 %v856, %v856
  %v1138 = vmul.f32 %v858, %v858
  %v1139 = vmul.f32 %v861, %v861
  %v1140 = vmul.f32 %v863, %v863
  %v1141 = vmul.f32 %v866, %v866
  %v1142 = vmul.f32 %v868, %v868
  %v1143 = vmul.f32 %v871, %v871
  %v1144 = vmul.f32 %v873, %v873
  %v1145 = vmul.f32 %v876, %v876
  %v1146 = vmul.f32 %v878, %v878
  %v1147 = vmul.f32 %v881, %v881
  %v1148 = vmul.f32 %v883, %v883
  %v1149 = vsel %vm885, %v1085, 0.0
  %v1150 = vsel %vm885, %v1086, 0.0
  %v1151 = vadd.f32 %v1149, %v1150
  %v1152 = vsel %vm885, %v1087, 0.0
  %v1153 = vadd.f32 %v1151, %v1152
  %v1154 = vsel %vm885, %v1088, 0.0
  %v1155 = vadd.f32 %v1153, %v1154
  %v1156 = vsel %vm885, %v1089, 0.0
  %v1157 = vadd.f32 %v1155, %v1156
  %v1158 = vsel %vm885, %v1090, 0.0
  %v1159 = vadd.f32 %v1157, %v1158
  %v1160 = vsel %vm885, %v1091, 0.0
  %v1161 = vadd.f32 %v1159, %v1160
  %v1162 = vsel %vm885, %v1092, 0.0
  %v1163 = vadd.f32 %v1161, %v1162
  %v1164 = vsel %vm885, %v1093, 0.0
  %v1165 = vadd.f32 %v1163, %v1164
  %v1166 = vsel %vm885, %v1094, 0.0
  %v1167 = vadd.f32 %v1165, %v1166
  %v1168 = vsel %vm885, %v1095, 0.0
  %v1169 = vadd.f32 %v1167, %v1168
  %v1170 = vsel %vm885, %v1096, 0.0
  %v1171 = vadd.f32 %v1169, %v1170
  %v1172 = vsel %vm885, %v1097, 0.0
  %v1173 = vadd.f32 %v1171, %v1172
  %v1174 = vsel %vm885, %v1098, 0.0
  %v1175 = vadd.f32 %v1173, %v1174
  %v1176 = vsel %vm885, %v1099, 0.0
  %v1177 = vadd.f32 %v1175, %v1176
  %v1178 = vsel %vm885, %v1100, 0.0
  %v1179 = vadd.f32 %v1177, %v1178
  %v1180 = vsel %vm885, %v1101, 0.0
  %v1181 = vadd.f32 %v1179, %v1180
  %v1182 = vsel %vm885, %v1102, 0.0
  %v1183 = vadd.f32 %v1181, %v1182
  %v1184 = vsel %vm885, %v1103, 0.0
  %v1185 = vadd.f32 %v1183, %v1184
  %v1186 = vsel %vm885, %v1104, 0.0
  %v1187 = vadd.f32 %v1185, %v1186
  %v1188 = vsel %vm885, %v1105, 0.0
  %v1189 = vadd.f32 %v1187, %v1188
  %v1190 = vsel %vm885, %v1106, 0.0
  %v1191 = vadd.f32 %v1189, %v1190
  %v1192 = vsel %vm885, %v1107, 0.0
  %v1193 = vadd.f32 %v1191, %v1192
  %v1194 = vsel %vm885, %v1108, 0.0
  %v1195 = vadd.f32 %v1193, %v1194
  %v1196 = vsel %vm885, %v1109, 0.0
  %v1197 = vadd.f32 %v1195, %v1196
  %v1198 = vsel %vm885, %v1110, 0.0
  %v1199 = vadd.f32 %v1197, %v1198
  %v1200 = vsel %vm885, %v1111, 0.0
  %v1201 = vadd.f32 %v1199, %v1200
  %v1202 = vsel %vm885, %v1112, 0.0
  %v1203 = vadd.f32 %v1201, %v1202
  %v1204 = vsel %vm885, %v1113, 0.0
  %v1205 = vadd.f32 %v1203, %v1204
  %v1206 = vsel %vm885, %v1114, 0.0
  %v1207 = vadd.f32 %v1205, %v1206
  %v1208 = vsel %vm885, %v1115, 0.0
  %v1209 = vadd.f32 %v1207, %v1208
  %v1210 = vsel %vm885, %v1116, 0.0
  %v1211 = vadd.f32 %v1209, %v1210
  %v1212 = vsel %vm885, %v1117, 0.0
  %v1213 = vadd.f32 %v1211, %v1212
  %v1214 = vsel %vm885, %v1118, 0.0
  %v1215 = vadd.f32 %v1213, %v1214
  %v1216 = vsel %vm885, %v1119, 0.0
  %v1217 = vadd.f32 %v1215, %v1216
  %v1218 = vsel %vm885, %v1120, 0.0
  %v1219 = vadd.f32 %v1217, %v1218
  %v1220 = vsel %vm885, %v1121, 0.0
  %v1221 = vadd.f32 %v1219, %v1220
  %v1222 = vsel %vm885, %v1122, 0.0
  %v1223 = vadd.f32 %v1221, %v1222
  %v1224 = vsel %vm885, %v1123, 0.0
  %v1225 = vadd.f32 %v1223, %v1224
  %v1226 = vsel %vm885, %v1124, 0.0
  %v1227 = vadd.f32 %v1225, %v1226
  %v1228 = vsel %vm885, %v1125, 0.0
  %v1229 = vadd.f32 %v1227, %v1228
  %v1230 = vsel %vm885, %v1126, 0.0
  %v1231 = vadd.f32 %v1229, %v1230
  %v1232 = vsel %vm885, %v1127, 0.0
  %v1233 = vadd.f32 %v1231, %v1232
  %v1234 = vsel %vm885, %v1128, 0.0
  %v1235 = vadd.f32 %v1233, %v1234
  %v1236 = vsel %vm885, %v1129, 0.0
  %v1237 = vadd.f32 %v1235, %v1236
  %v1238 = vsel %vm885, %v1130, 0.0
  %v1239 = vadd.f32 %v1237, %v1238
  %v1240 = vsel %vm885, %v1131, 0.0
  %v1241 = vadd.f32 %v1239, %v1240
  %v1242 = vsel %vm885, %v1132, 0.0
  %v1243 = vadd.f32 %v1241, %v1242
  %v1244 = vsel %vm885, %v1133, 0.0
  %v1245 = vadd.f32 %v1243, %v1244
  %v1246 = vsel %vm885, %v1134, 0.0
  %v1247 = vadd.f32 %v1245, %v1246
  %v1248 = vsel %vm885, %v1135, 0.0
  %v1249 = vadd.f32 %v1247, %v1248
  %v1250 = vsel %vm885, %v1136, 0.0
  %v1251 = vadd.f32 %v1249, %v1250
  %v1252 = vsel %vm885, %v1137, 0.0
  %v1253 = vadd.f32 %v1251, %v1252
  %v1254 = vsel %vm885, %v1138, 0.0
  %v1255 = vadd.f32 %v1253, %v1254
  %v1256 = vsel %vm885, %v1139, 0.0
  %v1257 = vadd.f32 %v1255, %v1256
  %v1258 = vsel %vm885, %v1140, 0.0
  %v1259 = vadd.f32 %v1257, %v1258
  %v1260 = vsel %vm885, %v1141, 0.0
  %v1261 = vadd.f32 %v1259, %v1260
  %v1262 = vsel %vm885, %v1142, 0.0
  %v1263 = vadd.f32 %v1261, %v1262
  %v1264 = vsel %vm885, %v1143, 0.0
  %v1265 = vadd.f32 %v1263, %v1264
  %v1266 = vsel %vm885, %v1144, 0.0
  %v1267 = vadd.f32 %v1265, %v1266
  %v1268 = vsel %vm885, %v1145, 0.0
  %v1269 = vadd.f32 %v1267, %v1268
  %v1270 = vsel %vm885, %v1146, 0.0
  %v1271 = vadd.f32 %v1269, %v1270
  %v1272 = vsel %vm885, %v1147, 0.0
  %v1273 = vadd.f32 %v1271, %v1272
  %v1274 = vsel %vm885, %v1148, 0.0
  %v1275 = vadd.f32 %v1273, %v1274
  %v1276 = vrot.slane %v1275, 4
  %v1277 = vadd.f32 %v1275, %v1276
  %v1278 = vrot.slane %v1277, 2
  %v1279 = vadd.f32 %v1277, %v1278
  %v1280 = vrot.slane %v1279, 1
  %v1281 = vadd.f32 %v1279, %v1280
  %1282 = vst.msk [vmem:[%s4] sm:$0x1] %vm1083, %v1281
  // Predicated region
  $region10: #{stage0_forward.2} parent=0 // pred_check
    _
  $region11: #{stage0_forward.2} parent=0 // pred_check_branch
    %1284 = sbr.rel (0) target = $region13
  $region12: #{stage0_forward.2} parent=0 // pred_region
    _
  $region13: #{stage0_forward.2} parent=0 // pred_fallthru
    _
  // Predicated region
  $region14: #{stage0_forward.2} parent=0 // pred_check
    _
  $region15: #{stage0_forward.2} parent=0 // pred_check_branch
    %1286 = sbr.rel (0) target = $region17
  $region16: #{stage0_forward.2} parent=0 // pred_region
    _
  $region17: #{stage0_forward.2} parent=0 // pred_fallthru
    _
  // Predicated region
  $region18: #{stage0_forward.2} parent=0 // pred_check
    _
  $region19: #{stage0_forward.2} parent=0 // pred_check_branch
    %1288 = sbr.rel (0) target = $region21
  $region20: #{stage0_forward.2} parent=0 // pred_region
    _
  $region21: #{stage0_forward.2} parent=0 // pred_fallthru
    _
  // Predicated region
  $region22: #{stage0_forward.2} parent=0 // pred_check
    _
  $region23: #{stage0_forward.2} parent=0 // pred_check_branch
    %1290 = sbr.rel (0) target = $region25
  $region24: #{stage0_forward.2} parent=0 // pred_region
    _
  $region25: #{stage0_forward.2} parent=0 // pred_fallthru
    _
  // Predicated region
  $region26: #{stage0_forward.2} parent=0 // pred_check
    _
  $region27: #{stage0_forward.2} parent=0 // pred_check_branch
    %1292 = sbr.rel (0) target = $region29
  $region28: #{stage0_forward.2} parent=0 // pred_region
    _
  $region29: #{stage0_forward.2} parent=0 // pred_fallthru
    _
  // Predicated region
  $region30: #{stage0_forward.2} parent=0 // pred_check
    _
  $region31: #{stage0_forward.2} parent=0 // pred_check_branch
    %1294 = sbr.rel (0) target = $region33
  $region32: #{stage0_forward.2} parent=0 // pred_region
    _
  $region33: #{stage0_forward.2} parent=0 // pred_fallthru
    _

</llo_original>
